<compile_context>
chip_gen: v7x
topology: tpu7x:2x2x1
jax: 0.10.0
libtpu: 0.0.40
codegen_flags: <defaults>
</compile_context>

<pallas_src>
import functools

import jax
import jax.numpy as jnp
from jax import lax
from jax.experimental import pallas as pl
from jax.experimental.pallas import tpu as pltpu


def _round_up(x, m):
    return (x + m - 1) // m * m


def _cdiv(a, b):
    return -(-a // b)


def _separable_conv_kernel(slab_ref, w1e_ref, w1o_ref, b1e_ref, b1o_ref,
                           w2e_ref, w2o_ref, b2_ref, o_ref, *, Wp, TH, mm_dtype):
    """One (batch, row-strip) tile per grid step.

    slab_ref: (1, 1, Cp, 128 + (TH+2)*Wp + 128)  guard|top|body|bot|guard
    w1e/w1o:  (Cp, 9)   3x3 depthwise weights for even/odd mid channels
    b1e/b1o:  (Cp, 1)   depthwise bias
    w2e/w2o:  (Cp, Cp)  1x1 pointwise weights acting on mid0 / mid1
    b2_ref:   (Cp, 1)   pointwise bias
    o_ref:    (1, Cp, TH*Wp)
    """
    LI = TH * Wp
    slab = slab_ref[0, 0]                          # (Cp, 256 + (TH+2)*Wp)
    x_in = slab[:, 128 + Wp:128 + Wp + LI]         # body strip; also the residual

    # Depthwise 3x3: centre tap carries the bias; remaining 8 taps are mask-free
    # statically shifted reads of the slab (halos/guards already in HBM layout).
    mid0 = w1e_ref[:, 4:5] * x_in + b1e_ref[...]   # mid channel 2c
    mid1 = w1o_ref[:, 4:5] * x_in + b1o_ref[...]   # mid channel 2c+1
    for dh in (-1, 0, 1):
        for dw in (-1, 0, 1):
            if dh == 0 and dw == 0:
                continue
            start = 128 + (1 + dh) * Wp + dw       # static lane offset
            shifted = slab[:, start:start + LI]
            kk = (dh + 1) * 3 + (dw + 1)
            mid0 = mid0 + w1e_ref[:, kk:kk + 1] * shifted
            mid1 = mid1 + w1o_ref[:, kk:kk + 1] * shifted

    # ReLU, then the 1x1 pointwise conv as two K=Cp MXU dots (no sublane
    # concat); bf16 operands, f32 accumulation.  Residual add + ReLU fused.
    mid0 = jnp.maximum(mid0, 0.0).astype(mm_dtype)
    mid1 = jnp.maximum(mid1, 0.0).astype(mm_dtype)
    out = jnp.dot(w2e_ref[...].astype(mm_dtype), mid0,
                  preferred_element_type=jnp.float32)
    out = out + jnp.dot(w2o_ref[...].astype(mm_dtype), mid1,
                        preferred_element_type=jnp.float32)
    out = jnp.maximum(out + b2_ref[...] + x_in, 0.0)
    o_ref[0] = out.astype(o_ref.dtype)


def separable_conv(x, w1, b1, w2, b2, *, row_budget_bytes=4 * 1024 * 1024,
                   matmul_dtype=jnp.bfloat16):
    """x: (N, C, H, W); w1: (2C,1,3,3); b1: (2C,); w2: (C,2C,1,1); b2: (C,)."""
    N, C, H, W = x.shape
    f32 = jnp.float32

    Cp = _round_up(C, 8)                    # sublane-aligned channels
    Wp = _round_up(W + 2, 128)              # lane-aligned padded row width
    assert Wp - W - 1 >= 1                  # garbage in padded cols is cropped

    # Strip sizing: big strips amortize per-step overhead and halo traffic, but
    # keep >= ~4 total grid steps (2 TCs on v7x + pipeline overlap), >= ~8 rows
    # per strip, and rebalance TH so padded rows (Hp - H) stay < S.
    bytes_per_row = Cp * Wp * 4
    max_rows = max(int(row_budget_bytes) // bytes_per_row, min(8, H))
    min_strips = min(_cdiv(4, N), _cdiv(H, 8))
    S = min(max(_cdiv(H, max_rows), min_strips, 1), H)
    TH = _cdiv(H, S)
    S = _cdiv(H, TH)                        # rebalance: waste < S rows
    Hp = S * TH
    LI = TH * Wp
    SLAB_L = 256 + (TH + 2) * Wp

    # Pad once (channels -> Cp, rows -> 1 + Hp + 1, cols -> 1 + W + rest), then
    # lay out per-strip slabs in HBM with the 1-row halos and the 128-lane zero
    # guards already baked in (strips overlap by one row in HBM).
    xpad = jnp.pad(x.astype(f32),
                   ((0, 0), (0, Cp - C), (1, Hp - H + 1), (1, Wp - W - 1)))
    row_idx = jnp.arange(S)[:, None] * TH + jnp.arange(TH + 2)[None, :]
    strips = jnp.transpose(xpad[:, :, row_idx, :], (0, 2, 1, 3, 4))
    slab = jnp.pad(strips.reshape(N, S, Cp, (TH + 2) * Wp),
                   ((0, 0), (0, 0), (0, 0), (128, 128)))    # (N, S, Cp, SLAB_L)

    # groups=C, channel multiplier 2: output channels 2c / 2c+1 read input ch c.
    w1e = jnp.pad(w1[0::2, 0].reshape(C, 9), ((0, Cp - C), (0, 0))).astype(f32)
    w1o = jnp.pad(w1[1::2, 0].reshape(C, 9), ((0, Cp - C), (0, 0))).astype(f32)
    b1e = jnp.pad(b1[0::2], (0, Cp - C)).reshape(Cp, 1).astype(f32)
    b1o = jnp.pad(b1[1::2], (0, Cp - C)).reshape(Cp, 1).astype(f32)
    w2e = jnp.pad(w2[:, 0::2, 0, 0], ((0, Cp - C), (0, Cp - C))).astype(f32)
    w2o = jnp.pad(w2[:, 1::2, 0, 0], ((0, Cp - C), (0, Cp - C))).astype(f32)
    b2p = jnp.pad(b2, (0, Cp - C)).reshape(Cp, 1).astype(f32)

    kernel = functools.partial(_separable_conv_kernel, Wp=Wp, TH=TH,
                               mm_dtype=matmul_dtype)

    def _full(shape):
        return pl.BlockSpec(shape, lambda n, s, _r=len(shape): (0,) * _r)

    # Right-size the VMEM request (v7x only has 64 MiB per TensorCore).
    vmem_limit = int(min(32 * 2**20,
                         max(4 * 2**20, 6 * Cp * (SLAB_L + LI) * 4)))

    out = pl.pallas_call(
        kernel,
        out_shape=jax.ShapeDtypeStruct((N, Cp, Hp * Wp), f32),
        grid=(N, S),
        in_specs=[
            pl.BlockSpec((1, 1, Cp, SLAB_L), lambda n, s: (n, s, 0, 0)),  # slab
            _full((Cp, 9)), _full((Cp, 9)),
            _full((Cp, 1)), _full((Cp, 1)),
            _full((Cp, Cp)), _full((Cp, Cp)),
            _full((Cp, 1)),
        ],
        out_specs=pl.BlockSpec((1, Cp, LI), lambda n, s: (n, 0, s)),
        compiler_params=pltpu.CompilerParams(
            dimension_semantics=("parallel", "parallel"),
            vmem_limit_bytes=vmem_limit),
    )(slab, w1e, w1o, b1e, b1o, w2e, w2o, b2p)

    return out.reshape(N, Cp, Hp, Wp)[:, :C, :H, 1:W + 1]


def separable_conv_ref(x, w1, b1, w2, b2):
    """Pure-JAX reference mirroring the PyTorch forward."""
    C = x.shape[1]
    mid = lax.conv_general_dilated(
        x, w1, window_strides=(1, 1), padding=((1, 1), (1, 1)),
        dimension_numbers=('NCHW', 'OIHW', 'NCHW'),
        feature_group_count=C, precision=lax.Precision.HIGHEST)
    mid = jnp.maximum(mid + b1[None, :, None, None], 0.0)
    out = lax.conv_general_dilated(
        mid, w2, window_strides=(1, 1), padding=((0, 0), (0, 0)),
        dimension_numbers=('NCHW', 'OIHW', 'NCHW'),
        precision=lax.Precision.HIGHEST)
    out = out + b2[None, :, None, None]
    return jnp.maximum(out + x, 0.0)


if __name__ == "__main__":
    def run_case(N, C, H, W, **kw):
        key = jax.random.PRNGKey(0)
        kx, k1, k2, k3, k4 = jax.random.split(key, 5)
        x = jax.random.normal(kx, (N, C, H, W), jnp.float32)
        w1 = 0.1 * jax.random.normal(k1, (2 * C, 1, 3, 3), jnp.float32)
        b1 = 0.1 * jax.random.normal(k2, (2 * C,), jnp.float32)
        w2 = 0.1 * jax.random.normal(k3, (C, 2 * C, 1, 1), jnp.float32)
        b2 = 0.1 * jax.random.normal(k4, (C,), jnp.float32)
        out = jax.block_until_ready(separable_conv(x, w1, b1, w2, b2, **kw))
        ref = jax.block_until_ready(separable_conv_ref(x, w1, b1, w2, b2))
        assert out.shape == x.shape and out.dtype == jnp.float32
        err = float(jnp.max(jnp.abs(out - ref)))
        # bf16 pointwise matmul operands -> slightly looser tolerance than f32.
        assert err < 2e-2, f"max abs err {err}"

    # C < 8 exercises channel padding; S=2 strips (>=4 grid steps for v7x).
    run_case(2, 6, 16, 16)
    # Ragged H (padded rows in the last strip) and ragged W.
    run_case(1, 4, 13, 20)
    # Cp=16, small row budget -> 5 strips, ragged last strip.
    run_case(1, 10, 33, 24, row_budget_bytes=64 * 1024)
    print("KERNEL_OK")
</pallas_src>

<mosaic_0001>
module attributes {stable_mosaic.version = 11 : i64} {
  func.func @_separable_conv_kernel(%arg0: i32, %arg1: i32, %arg2: memref<1x1x8x1536xf32, #tpu.memory_space<vmem>>, %arg3: memref<8x9xf32, #tpu.memory_space<vmem>>, %arg4: memref<8x9xf32, #tpu.memory_space<vmem>>, %arg5: memref<8x1xf32, #tpu.memory_space<vmem>>, %arg6: memref<8x1xf32, #tpu.memory_space<vmem>>, %arg7: memref<8x8xf32, #tpu.memory_space<vmem>>, %arg8: memref<8x8xf32, #tpu.memory_space<vmem>>, %arg9: memref<8x1xf32, #tpu.memory_space<vmem>>, %arg10: memref<1x8x1024xf32, #tpu.memory_space<vmem>>) attributes {dimension_semantics = [#tpu.dimension_semantics<parallel>, #tpu.dimension_semantics<parallel>], iteration_bounds = array<i64: 2, 2>, scalar_prefetch = 0 : i64, scratch_operands = 0 : i64, tpu.core_type = #tpu.core_type<tc>, window_params = [{transform_indices = @transform_0, window_bounds = array<i64: 1, 1, 8, 1536>}, {pipeline_mode = #tpu.pipeline_mode<synchronous>, transform_indices = @transform_1, window_bounds = array<i64: 8, 9>}, {pipeline_mode = #tpu.pipeline_mode<synchronous>, transform_indices = @transform_2, window_bounds = array<i64: 8, 9>}, {pipeline_mode = #tpu.pipeline_mode<synchronous>, transform_indices = @transform_3, window_bounds = array<i64: 8, 1>}, {pipeline_mode = #tpu.pipeline_mode<synchronous>, transform_indices = @transform_4, window_bounds = array<i64: 8, 1>}, {pipeline_mode = #tpu.pipeline_mode<synchronous>, transform_indices = @transform_5, window_bounds = array<i64: 8, 8>}, {pipeline_mode = #tpu.pipeline_mode<synchronous>, transform_indices = @transform_6, window_bounds = array<i64: 8, 8>}, {pipeline_mode = #tpu.pipeline_mode<synchronous>, transform_indices = @transform_7, window_bounds = array<i64: 8, 1>}, {transform_indices = @transform_8, window_bounds = array<i64: 1, 8, 1024>}]} {
    %c0 = arith.constant 0 : index
    %c0_0 = arith.constant 0 : index
    %c0_1 = arith.constant 0 : index
    %c0_2 = arith.constant 0 : index
    %0 = vector.load %arg2[%c0, %c0_0, %c0_1, %c0_2] : memref<1x1x8x1536xf32, #tpu.memory_space<vmem>>, vector<1x1x8x1536xf32>
    %1 = vector.shape_cast %0 : vector<1x1x8x1536xf32> to vector<8x1536xf32>
    %2 = vector.extract_strided_slice %1 {offsets = [0, 256], sizes = [8, 1024], strides = [1, 1]} : vector<8x1536xf32> to vector<8x1024xf32>
    %c0_3 = arith.constant 0 : index
    %c4 = arith.constant 4 : index
    %3 = vector.load %arg3[%c0_3, %c4] : memref<8x9xf32, #tpu.memory_space<vmem>>, vector<8x1xf32>
    %4 = vector.broadcast %3 : vector<8x1xf32> to vector<8x1024xf32>
    %5 = arith.mulf %4, %2 : vector<8x1024xf32>
    %c0_4 = arith.constant 0 : index
    %c0_5 = arith.constant 0 : index
    %6 = vector.load %arg5[%c0_4, %c0_5] : memref<8x1xf32, #tpu.memory_space<vmem>>, vector<8x1xf32>
    %7 = vector.broadcast %6 : vector<8x1xf32> to vector<8x1024xf32>
    %8 = arith.addf %5, %7 : vector<8x1024xf32>
    %c0_6 = arith.constant 0 : index
    %c4_7 = arith.constant 4 : index
    %9 = vector.load %arg4[%c0_6, %c4_7] : memref<8x9xf32, #tpu.memory_space<vmem>>, vector<8x1xf32>
    %10 = vector.broadcast %9 : vector<8x1xf32> to vector<8x1024xf32>
    %11 = arith.mulf %10, %2 : vector<8x1024xf32>
    %c0_8 = arith.constant 0 : index
    %c0_9 = arith.constant 0 : index
    %12 = vector.load %arg6[%c0_8, %c0_9] : memref<8x1xf32, #tpu.memory_space<vmem>>, vector<8x1xf32>
    %13 = vector.broadcast %12 : vector<8x1xf32> to vector<8x1024xf32>
    %14 = arith.addf %11, %13 : vector<8x1024xf32>
    %15 = vector.extract_strided_slice %1 {offsets = [0, 127], sizes = [8, 1024], strides = [1, 1]} : vector<8x1536xf32> to vector<8x1024xf32>
    %c0_10 = arith.constant 0 : index
    %c0_11 = arith.constant 0 : index
    %16 = vector.load %arg3[%c0_10, %c0_11] : memref<8x9xf32, #tpu.memory_space<vmem>>, vector<8x1xf32>
    %17 = vector.broadcast %16 : vector<8x1xf32> to vector<8x1024xf32>
    %18 = arith.mulf %17, %15 : vector<8x1024xf32>
    %19 = arith.addf %8, %18 : vector<8x1024xf32>
    %c0_12 = arith.constant 0 : index
    %c0_13 = arith.constant 0 : index
    %20 = vector.load %arg4[%c0_12, %c0_13] : memref<8x9xf32, #tpu.memory_space<vmem>>, vector<8x1xf32>
    %21 = vector.broadcast %20 : vector<8x1xf32> to vector<8x1024xf32>
    %22 = arith.mulf %21, %15 : vector<8x1024xf32>
    %23 = arith.addf %14, %22 : vector<8x1024xf32>
    %24 = vector.extract_strided_slice %1 {offsets = [0, 128], sizes = [8, 1024], strides = [1, 1]} : vector<8x1536xf32> to vector<8x1024xf32>
    %c0_14 = arith.constant 0 : index
    %c1 = arith.constant 1 : index
    %25 = vector.load %arg3[%c0_14, %c1] : memref<8x9xf32, #tpu.memory_space<vmem>>, vector<8x1xf32>
    %26 = vector.broadcast %25 : vector<8x1xf32> to vector<8x1024xf32>
    %27 = arith.mulf %26, %24 : vector<8x1024xf32>
    %28 = arith.addf %19, %27 : vector<8x1024xf32>
    %c0_15 = arith.constant 0 : index
    %c1_16 = arith.constant 1 : index
    %29 = vector.load %arg4[%c0_15, %c1_16] : memref<8x9xf32, #tpu.memory_space<vmem>>, vector<8x1xf32>
    %30 = vector.broadcast %29 : vector<8x1xf32> to vector<8x1024xf32>
    %31 = arith.mulf %30, %24 : vector<8x1024xf32>
    %32 = arith.addf %23, %31 : vector<8x1024xf32>
    %33 = vector.extract_strided_slice %1 {offsets = [0, 129], sizes = [8, 1024], strides = [1, 1]} : vector<8x1536xf32> to vector<8x1024xf32>
    %c0_17 = arith.constant 0 : index
    %c2 = arith.constant 2 : index
    %34 = vector.load %arg3[%c0_17, %c2] : memref<8x9xf32, #tpu.memory_space<vmem>>, vector<8x1xf32>
    %35 = vector.broadcast %34 : vector<8x1xf32> to vector<8x1024xf32>
    %36 = arith.mulf %35, %33 : vector<8x1024xf32>
    %37 = arith.addf %28, %36 : vector<8x1024xf32>
    %c0_18 = arith.constant 0 : index
    %c2_19 = arith.constant 2 : index
    %38 = vector.load %arg4[%c0_18, %c2_19] : memref<8x9xf32, #tpu.memory_space<vmem>>, vector<8x1xf32>
    %39 = vector.broadcast %38 : vector<8x1xf32> to vector<8x1024xf32>
    %40 = arith.mulf %39, %33 : vector<8x1024xf32>
    %41 = arith.addf %32, %40 : vector<8x1024xf32>
    %42 = vector.extract_strided_slice %1 {offsets = [0, 255], sizes = [8, 1024], strides = [1, 1]} : vector<8x1536xf32> to vector<8x1024xf32>
    %c0_20 = arith.constant 0 : index
    %c3 = arith.constant 3 : index
    %43 = vector.load %arg3[%c0_20, %c3] : memref<8x9xf32, #tpu.memory_space<vmem>>, vector<8x1xf32>
    %44 = vector.broadcast %43 : vector<8x1xf32> to vector<8x1024xf32>
    %45 = arith.mulf %44, %42 : vector<8x1024xf32>
    %46 = arith.addf %37, %45 : vector<8x1024xf32>
    %c0_21 = arith.constant 0 : index
    %c3_22 = arith.constant 3 : index
    %47 = vector.load %arg4[%c0_21, %c3_22] : memref<8x9xf32, #tpu.memory_space<vmem>>, vector<8x1xf32>
    %48 = vector.broadcast %47 : vector<8x1xf32> to vector<8x1024xf32>
    %49 = arith.mulf %48, %42 : vector<8x1024xf32>
    %50 = arith.addf %41, %49 : vector<8x1024xf32>
    %51 = vector.extract_strided_slice %1 {offsets = [0, 257], sizes = [8, 1024], strides = [1, 1]} : vector<8x1536xf32> to vector<8x1024xf32>
    %c0_23 = arith.constant 0 : index
    %c5 = arith.constant 5 : index
    %52 = vector.load %arg3[%c0_23, %c5] : memref<8x9xf32, #tpu.memory_space<vmem>>, vector<8x1xf32>
    %53 = vector.broadcast %52 : vector<8x1xf32> to vector<8x1024xf32>
    %54 = arith.mulf %53, %51 : vector<8x1024xf32>
    %55 = arith.addf %46, %54 : vector<8x1024xf32>
    %c0_24 = arith.constant 0 : index
    %c5_25 = arith.constant 5 : index
    %56 = vector.load %arg4[%c0_24, %c5_25] : memref<8x9xf32, #tpu.memory_space<vmem>>, vector<8x1xf32>
    %57 = vector.broadcast %56 : vector<8x1xf32> to vector<8x1024xf32>
    %58 = arith.mulf %57, %51 : vector<8x1024xf32>
    %59 = arith.addf %50, %58 : vector<8x1024xf32>
    %60 = vector.extract_strided_slice %1 {offsets = [0, 383], sizes = [8, 1024], strides = [1, 1]} : vector<8x1536xf32> to vector<8x1024xf32>
    %c0_26 = arith.constant 0 : index
    %c6 = arith.constant 6 : index
    %61 = vector.load %arg3[%c0_26, %c6] : memref<8x9xf32, #tpu.memory_space<vmem>>, vector<8x1xf32>
    %62 = vector.broadcast %61 : vector<8x1xf32> to vector<8x1024xf32>
    %63 = arith.mulf %62, %60 : vector<8x1024xf32>
    %64 = arith.addf %55, %63 : vector<8x1024xf32>
    %c0_27 = arith.constant 0 : index
    %c6_28 = arith.constant 6 : index
    %65 = vector.load %arg4[%c0_27, %c6_28] : memref<8x9xf32, #tpu.memory_space<vmem>>, vector<8x1xf32>
    %66 = vector.broadcast %65 : vector<8x1xf32> to vector<8x1024xf32>
    %67 = arith.mulf %66, %60 : vector<8x1024xf32>
    %68 = arith.addf %59, %67 : vector<8x1024xf32>
    %69 = vector.extract_strided_slice %1 {offsets = [0, 384], sizes = [8, 1024], strides = [1, 1]} : vector<8x1536xf32> to vector<8x1024xf32>
    %c0_29 = arith.constant 0 : index
    %c7 = arith.constant 7 : index
    %70 = vector.load %arg3[%c0_29, %c7] : memref<8x9xf32, #tpu.memory_space<vmem>>, vector<8x1xf32>
    %71 = vector.broadcast %70 : vector<8x1xf32> to vector<8x1024xf32>
    %72 = arith.mulf %71, %69 : vector<8x1024xf32>
    %73 = arith.addf %64, %72 : vector<8x1024xf32>
    %c0_30 = arith.constant 0 : index
    %c7_31 = arith.constant 7 : index
    %74 = vector.load %arg4[%c0_30, %c7_31] : memref<8x9xf32, #tpu.memory_space<vmem>>, vector<8x1xf32>
    %75 = vector.broadcast %74 : vector<8x1xf32> to vector<8x1024xf32>
    %76 = arith.mulf %75, %69 : vector<8x1024xf32>
    %77 = arith.addf %68, %76 : vector<8x1024xf32>
    %78 = vector.extract_strided_slice %1 {offsets = [0, 385], sizes = [8, 1024], strides = [1, 1]} : vector<8x1536xf32> to vector<8x1024xf32>
    %c0_32 = arith.constant 0 : index
    %c8 = arith.constant 8 : index
    %79 = vector.load %arg3[%c0_32, %c8] : memref<8x9xf32, #tpu.memory_space<vmem>>, vector<8x1xf32>
    %80 = vector.broadcast %79 : vector<8x1xf32> to vector<8x1024xf32>
    %81 = arith.mulf %80, %78 : vector<8x1024xf32>
    %82 = arith.addf %73, %81 : vector<8x1024xf32>
    %c0_33 = arith.constant 0 : index
    %c8_34 = arith.constant 8 : index
    %83 = vector.load %arg4[%c0_33, %c8_34] : memref<8x9xf32, #tpu.memory_space<vmem>>, vector<8x1xf32>
    %84 = vector.broadcast %83 : vector<8x1xf32> to vector<8x1024xf32>
    %85 = arith.mulf %84, %78 : vector<8x1024xf32>
    %86 = arith.addf %77, %85 : vector<8x1024xf32>
    %cst = arith.constant 0.000000e+00 : f32
    %87 = vector.broadcast %cst : f32 to vector<8x1024xf32>
    %88 = arith.maximumf %82, %87 : vector<8x1024xf32>
    %89 = arith.truncf %88 : vector<8x1024xf32> to vector<8x1024xbf16>
    %cst_35 = arith.constant 0.000000e+00 : f32
    %90 = vector.broadcast %cst_35 : f32 to vector<8x1024xf32>
    %91 = arith.maximumf %86, %90 : vector<8x1024xf32>
    %92 = arith.truncf %91 : vector<8x1024xf32> to vector<8x1024xbf16>
    %c0_36 = arith.constant 0 : index
    %c0_37 = arith.constant 0 : index
    %93 = vector.load %arg7[%c0_36, %c0_37] : memref<8x8xf32, #tpu.memory_space<vmem>>, vector<8x8xf32>
    %94 = arith.truncf %93 : vector<8x8xf32> to vector<8x8xbf16>
    %cst_38 = arith.constant dense<0.000000e+00> : vector<8x1024xf32>
    %95 = tpu.matmul %94, %89, %cst_38 {dimension_numbers = #tpu.dot_dimension_numbers<[1], [0], [0], [1], [0, 0, 1, 1], [], []>} : vector<8x8xbf16>, vector<8x1024xbf16>, vector<8x1024xf32> -> vector<8x1024xf32>
    %c0_39 = arith.constant 0 : index
    %c0_40 = arith.constant 0 : index
    %96 = vector.load %arg8[%c0_39, %c0_40] : memref<8x8xf32, #tpu.memory_space<vmem>>, vector<8x8xf32>
    %97 = arith.truncf %96 : vector<8x8xf32> to vector<8x8xbf16>
    %cst_41 = arith.constant dense<0.000000e+00> : vector<8x1024xf32>
    %98 = tpu.matmul %97, %92, %cst_41 {dimension_numbers = #tpu.dot_dimension_numbers<[1], [0], [0], [1], [0, 0, 1, 1], [], []>} : vector<8x8xbf16>, vector<8x1024xbf16>, vector<8x1024xf32> -> vector<8x1024xf32>
    %99 = arith.addf %95, %98 : vector<8x1024xf32>
    %c0_42 = arith.constant 0 : index
    %c0_43 = arith.constant 0 : index
    %100 = vector.load %arg9[%c0_42, %c0_43] : memref<8x1xf32, #tpu.memory_space<vmem>>, vector<8x1xf32>
    %101 = vector.broadcast %100 : vector<8x1xf32> to vector<8x1024xf32>
    %102 = arith.addf %99, %101 : vector<8x1024xf32>
    %103 = arith.addf %102, %2 : vector<8x1024xf32>
    %cst_44 = arith.constant 0.000000e+00 : f32
    %104 = vector.broadcast %cst_44 : f32 to vector<8x1024xf32>
    %105 = arith.maximumf %103, %104 : vector<8x1024xf32>
    %c0_45 = arith.constant 0 : index
    %c0_46 = arith.constant 0 : index
    %c0_47 = arith.constant 0 : index
    %106 = vector.load %arg10[%c0_45, %c0_46, %c0_47] : memref<1x8x1024xf32, #tpu.memory_space<vmem>>, vector<1x8x1024xf32>
    %107 = vector.shape_cast %106 : vector<1x8x1024xf32> to vector<8x1024xf32>
    %108 = vector.shape_cast %105 : vector<8x1024xf32> to vector<1x8x1024xf32>
    tpu.vector_store %arg10[%c0_45, %c0_46, %c0_47], %108 {strides = array<i32>} : memref<1x8x1024xf32, #tpu.memory_space<vmem>>, vector<1x8x1024xf32>,
    return
  }
  func.func @transform_0(%arg0: i32, %arg1: i32) -> (i32, i32, i32, i32) {
    %c0_i32 = arith.constant 0 : i32
    %c0_i32_0 = arith.constant 0 : i32
    %c0_i32_1 = arith.constant 0 : i32
    return %arg0, %arg1, %c0_i32, %c0_i32_0 : i32, i32, i32, i32
  }
  func.func @transform_1(%arg0: i32, %arg1: i32) -> (i32, i32) {
    %c0_i32 = arith.constant 0 : i32
    %c0_i32_0 = arith.constant 0 : i32
    %c0_i32_1 = arith.constant 0 : i32
    return %c0_i32, %c0_i32_0 : i32, i32
  }
  func.func @transform_2(%arg0: i32, %arg1: i32) -> (i32, i32) {
    %c0_i32 = arith.constant 0 : i32
    %c0_i32_0 = arith.constant 0 : i32
    %c0_i32_1 = arith.constant 0 : i32
    return %c0_i32, %c0_i32_0 : i32, i32
  }
  func.func @transform_3(%arg0: i32, %arg1: i32) -> (i32, i32) {
    %c0_i32 = arith.constant 0 : i32
    %c0_i32_0 = arith.constant 0 : i32
    %c0_i32_1 = arith.constant 0 : i32
    return %c0_i32, %c0_i32_0 : i32, i32
  }
  func.func @transform_4(%arg0: i32, %arg1: i32) -> (i32, i32) {
    %c0_i32 = arith.constant 0 : i32
    %c0_i32_0 = arith.constant 0 : i32
    %c0_i32_1 = arith.constant 0 : i32
    return %c0_i32, %c0_i32_0 : i32, i32
  }
  func.func @transform_5(%arg0: i32, %arg1: i32) -> (i32, i32) {
    %c0_i32 = arith.constant 0 : i32
    %c0_i32_0 = arith.constant 0 : i32
    %c0_i32_1 = arith.constant 0 : i32
    return %c0_i32, %c0_i32_0 : i32, i32
  }
  func.func @transform_6(%arg0: i32, %arg1: i32) -> (i32, i32) {
    %c0_i32 = arith.constant 0 : i32
    %c0_i32_0 = arith.constant 0 : i32
    %c0_i32_1 = arith.constant 0 : i32
    return %c0_i32, %c0_i32_0 : i32, i32
  }
  func.func @transform_7(%arg0: i32, %arg1: i32) -> (i32, i32) {
    %c0_i32 = arith.constant 0 : i32
    %c0_i32_0 = arith.constant 0 : i32
    %c0_i32_1 = arith.constant 0 : i32
    return %c0_i32, %c0_i32_0 : i32, i32
  }
  func.func @transform_8(%arg0: i32, %arg1: i32) -> (i32, i32, i32) {
    %c0_i32 = arith.constant 0 : i32
    %c0_i32_0 = arith.constant 0 : i32
    return %arg0, %c0_i32, %arg1 : i32, i32, i32
  }
}

</mosaic_0001>

<llo_original>
// kernel: tpu_custom_call.1
$region0: #{tpu_custom_call.1}
  #allocation0 [shape = 'u32[]', space=smem, size = 0x4, offset = 0x4, fixed_abs, tag = 'smem constant byte address 0x4 - core index']
  #allocation1 [shape = 'u32[144,128]{1,0:T(1,128)}', space=vmem, size = 0x12000, scoped, tag = 'internal scratch']
  %s0 = inlined_call_operand.hbm [shape: f32[2,2,8,1536], index: 0, kind: input, shape index: {}]
  %s1 = inlined_call_operand.vmem [shape: f32[8,9], index: 1, kind: input, shape index: {}]
  %s2 = inlined_call_operand.vmem [shape: f32[8,9], index: 2, kind: input, shape index: {}]
  %s3 = inlined_call_operand.vmem [shape: f32[8,1], index: 3, kind: input, shape index: {}]
  %s4 = inlined_call_operand.vmem [shape: f32[8,1], index: 4, kind: input, shape index: {}]
  %s5 = inlined_call_operand.vmem [shape: f32[8,8], index: 5, kind: input, shape index: {}]
  %s6 = inlined_call_operand.vmem [shape: f32[8,8], index: 6, kind: input, shape index: {}]
  %s7 = inlined_call_operand.vmem [shape: f32[8,1], index: 7, kind: input, shape index: {}]
  %s8 = inlined_call_operand.hbm [shape: f32[2,8,2048], index: 8, kind: output, shape index: {}]
  %s9 = sld [smem:[#allocation0]]
  $region69: #{tpu_custom_call.1} parent=0
    _
  %s11 = ssub.s32 1, %s9
  %s12 = scalar_select 0, %s11, %s9
  $region1: #{tpu_custom_call.1} parent=0
    #allocation2 [shape = 'u8[98304]{0}', space=vmem, size = 0x18000, scoped, tag = 'input window, operand 0']
    #allocation3 [shape = 's32[2]{0}', space=sflag, size = 0x8, scoped, tag = 'scoped memory for tpu_custom_call.1']
    #allocation4 [shape = 's32[2]{0}', space=sflag, size = 0x8, scoped, tag = 'scoped memory for tpu_custom_call.1']
    #allocation5 [shape = 'u8[65536]{0}', space=vmem, size = 0x10000, scoped, tag = 'output window, operand 0']
    %13 = vsyncpa [#allocation3], 0
    %s14 = scalar_lea.sflag [#allocation3], 1
    %15 = vsyncpa %s14, 0
    %16 = vsyncpa [#allocation4], 0
    %s17 = scalar_lea.sflag [#allocation4], 1
    %18 = vsyncpa %s17, 0
    loop: start=0, step=1, limit=6
    $region2: #{tpu_custom_call.1} parent=1 // loop_pre_header
      _
    $region3: #{tpu_custom_call.1} parent=1 // loop_header
      %s20 = sphi 0, %s24
      %p21 = scmp.ge.s32.totalorder %s20, 6
      %s27 = sphi 0, %s39
      %s28 = sphi 0, %s35
      %s29 = sphi 0, %s27
      %s30 = sphi 0, %s28
      %s31 = sphi 0, %s29
      %s32 = sphi 0, %s30
      %s44 = sphi 0, %s46
      %s47 = sphi 0, %s44
      %s48 = sphi 0, %s47
      %s64 = sphi 0, %s48
      %s68 = sphi 0, %s68
      %s70 = sphi 0, %s68
      %s71 = sphi 0, %s70
      %s85 = sphi 0, %s71
      %s89 = sphi 0, %s89
      %s91 = sphi 0, %s89
      %s92 = sphi 0, %s91
      %s106 = sphi 0, %s92
      %s110 = sphi 0, %s110
      %s112 = sphi 0, %s110
      %s113 = sphi 0, %s112
      %s127 = sphi 0, %s113
      %s131 = sphi 0, %s131
      %s133 = sphi 0, %s131
      %s134 = sphi 0, %s133
      %s148 = sphi 0, %s134
      %s152 = sphi 0, %s152
      %s154 = sphi 0, %s152
      %s155 = sphi 0, %s154
      %s169 = sphi 0, %s155
      %s173 = sphi 0, %s173
      %s175 = sphi 0, %s173
      %s176 = sphi 0, %s175
      %s190 = sphi 0, %s176
      %s194 = sphi 0, %s194
      %s196 = sphi 0, %s194
      %s197 = sphi 0, %s196
      %s211 = sphi 0, %s197
      %s219 = sphi 0, %s221
      %s222 = sphi 0, %s219
      %s223 = sphi 0, %s222
      %s239 = sphi 0, %s223
    $region4: #{tpu_custom_call.1} parent=1 // loop_header_branch
      %23 = sbr.rel (%p21) target = $region8
    $region5: #{tpu_custom_call.1} parent=1 // loop_body
      %s25 = ssub.s32 %s20, 1
      %s26 = ssub.s32 %s20, 2
      %s33 = sadd.s32 1, %s28
      %p34 = scmp.ge.s32.totalorder %s33, 2
      %s35 = scalar_select %p34, 0, %s33
      %s36 = sadd.s32 1, %s27
      %s37 = scalar_select %p34, %s36, %s27
      %p38 = scmp.ge.s32.totalorder %s37, 2
      %s39 = scalar_select %p38, 0, %s37
      %s40 = ssub.s32 %s27, %s39
      %s41 = ssub.s32 %s28, %s35
      %s42 = sor.u32 %s40, %s41
      %p43 = scmp.eq.s32.totalorder %s42, 0
      %s45 = sadd.s32 %s44, 1
      %s46 = scalar_select %p43, %s44, %s45
      %p49 = pneg %p43
      %p50 = scmp.eq.s32.totalorder %s20, 3
      %p51 = por %p49, %p50
      %p52 = scmp.ne.s32.totalorder %s44, %s47
      %p53 = scmp.eq.s32.totalorder %s20, 0
      %p54 = por %p52, %p53
      %p55 = scmp.ne.s32.totalorder %s44, %s47
      %p56 = scmp.eq.s32.totalorder %s25, 3
      %p57 = por %p55, %p56
      %p58 = scmp.ne.s32.totalorder %s47, %s48
      %p59 = scmp.eq.s32.totalorder %s25, 0
      %p60 = por %p58, %p59
      %p61 = scmp.ne.s32.totalorder %s47, %s48
      %p62 = scmp.eq.s32.totalorder %s26, 3
      %p63 = por %p61, %p62
      %p65 = scmp.ne.s32.totalorder %s48, %s64
      %p66 = scmp.eq.s32.totalorder %s26, 0
      %p67 = por %p65, %p66
      %s69 = sadd.s32 %s68, 1
      %p72 = scmp.eq.s32.totalorder %s20, 3
      %p73 = scmp.ne.s32.totalorder %s68, %s70
      %p74 = scmp.eq.s32.totalorder %s20, 0
      %p75 = por %p73, %p74
      %p76 = scmp.ne.s32.totalorder %s68, %s70
      %p77 = scmp.eq.s32.totalorder %s25, 3
      %p78 = por %p76, %p77
      %p79 = scmp.ne.s32.totalorder %s70, %s71
      %p80 = scmp.eq.s32.totalorder %s25, 0
      %p81 = por %p79, %p80
      %p82 = scmp.ne.s32.totalorder %s70, %s71
      %p83 = scmp.eq.s32.totalorder %s26, 3
      %p84 = por %p82, %p83
      %p86 = scmp.ne.s32.totalorder %s71, %s85
      %p87 = scmp.eq.s32.totalorder %s26, 0
      %p88 = por %p86, %p87
      %s90 = sadd.s32 %s89, 1
      %p93 = scmp.eq.s32.totalorder %s20, 3
      %p94 = scmp.ne.s32.totalorder %s89, %s91
      %p95 = scmp.eq.s32.totalorder %s20, 0
      %p96 = por %p94, %p95
      %p97 = scmp.ne.s32.totalorder %s89, %s91
      %p98 = scmp.eq.s32.totalorder %s25, 3
      %p99 = por %p97, %p98
      %p100 = scmp.ne.s32.totalorder %s91, %s92
      %p101 = scmp.eq.s32.totalorder %s25, 0
      %p102 = por %p100, %p101
      %p103 = scmp.ne.s32.totalorder %s91, %s92
      %p104 = scmp.eq.s32.totalorder %s26, 3
      %p105 = por %p103, %p104
      %p107 = scmp.ne.s32.totalorder %s92, %s106
      %p108 = scmp.eq.s32.totalorder %s26, 0
      %p109 = por %p107, %p108
      %s111 = sadd.s32 %s110, 1
      %p114 = scmp.eq.s32.totalorder %s20, 3
      %p115 = scmp.ne.s32.totalorder %s110, %s112
      %p116 = scmp.eq.s32.totalorder %s20, 0
      %p117 = por %p115, %p116
      %p118 = scmp.ne.s32.totalorder %s110, %s112
      %p119 = scmp.eq.s32.totalorder %s25, 3
      %p120 = por %p118, %p119
      %p121 = scmp.ne.s32.totalorder %s112, %s113
      %p122 = scmp.eq.s32.totalorder %s25, 0
      %p123 = por %p121, %p122
      %p124 = scmp.ne.s32.totalorder %s112, %s113
      %p125 = scmp.eq.s32.totalorder %s26, 3
      %p126 = por %p124, %p125
      %p128 = scmp.ne.s32.totalorder %s113, %s127
      %p129 = scmp.eq.s32.totalorder %s26, 0
      %p130 = por %p128, %p129
      %s132 = sadd.s32 %s131, 1
      %p135 = scmp.eq.s32.totalorder %s20, 3
      %p136 = scmp.ne.s32.totalorder %s131, %s133
      %p137 = scmp.eq.s32.totalorder %s20, 0
      %p138 = por %p136, %p137
      %p139 = scmp.ne.s32.totalorder %s131, %s133
      %p140 = scmp.eq.s32.totalorder %s25, 3
      %p141 = por %p139, %p140
      %p142 = scmp.ne.s32.totalorder %s133, %s134
      %p143 = scmp.eq.s32.totalorder %s25, 0
      %p144 = por %p142, %p143
      %p145 = scmp.ne.s32.totalorder %s133, %s134
      %p146 = scmp.eq.s32.totalorder %s26, 3
      %p147 = por %p145, %p146
      %p149 = scmp.ne.s32.totalorder %s134, %s148
      %p150 = scmp.eq.s32.totalorder %s26, 0
      %p151 = por %p149, %p150
      %s153 = sadd.s32 %s152, 1
      %p156 = scmp.eq.s32.totalorder %s20, 3
      %p157 = scmp.ne.s32.totalorder %s152, %s154
      %p158 = scmp.eq.s32.totalorder %s20, 0
      %p159 = por %p157, %p158
      %p160 = scmp.ne.s32.totalorder %s152, %s154
      %p161 = scmp.eq.s32.totalorder %s25, 3
      %p162 = por %p160, %p161
      %p163 = scmp.ne.s32.totalorder %s154, %s155
      %p164 = scmp.eq.s32.totalorder %s25, 0
      %p165 = por %p163, %p164
      %p166 = scmp.ne.s32.totalorder %s154, %s155
      %p167 = scmp.eq.s32.totalorder %s26, 3
      %p168 = por %p166, %p167
      %p170 = scmp.ne.s32.totalorder %s155, %s169
      %p171 = scmp.eq.s32.totalorder %s26, 0
      %p172 = por %p170, %p171
      %s174 = sadd.s32 %s173, 1
      %p177 = scmp.eq.s32.totalorder %s20, 3
      %p178 = scmp.ne.s32.totalorder %s173, %s175
      %p179 = scmp.eq.s32.totalorder %s20, 0
      %p180 = por %p178, %p179
      %p181 = scmp.ne.s32.totalorder %s173, %s175
      %p182 = scmp.eq.s32.totalorder %s25, 3
      %p183 = por %p181, %p182
      %p184 = scmp.ne.s32.totalorder %s175, %s176
      %p185 = scmp.eq.s32.totalorder %s25, 0
      %p186 = por %p184, %p185
      %p187 = scmp.ne.s32.totalorder %s175, %s176
      %p188 = scmp.eq.s32.totalorder %s26, 3
      %p189 = por %p187, %p188
      %p191 = scmp.ne.s32.totalorder %s176, %s190
      %p192 = scmp.eq.s32.totalorder %s26, 0
      %p193 = por %p191, %p192
      %s195 = sadd.s32 %s194, 1
      %p198 = scmp.eq.s32.totalorder %s20, 3
      %p199 = scmp.ne.s32.totalorder %s194, %s196
      %p200 = scmp.eq.s32.totalorder %s20, 0
      %p201 = por %p199, %p200
      %p202 = scmp.ne.s32.totalorder %s194, %s196
      %p203 = scmp.eq.s32.totalorder %s25, 3
      %p204 = por %p202, %p203
      %p205 = scmp.ne.s32.totalorder %s196, %s197
      %p206 = scmp.eq.s32.totalorder %s25, 0
      %p207 = por %p205, %p206
      %p208 = scmp.ne.s32.totalorder %s196, %s197
      %p209 = scmp.eq.s32.totalorder %s26, 3
      %p210 = por %p208, %p209
      %p212 = scmp.ne.s32.totalorder %s197, %s211
      %p213 = scmp.eq.s32.totalorder %s26, 0
      %p214 = por %p212, %p213
      %s215 = ssub.s32 %s27, %s39
      %s216 = ssub.s32 %s28, %s35
      %s217 = sor.u32 %s215, %s216
      %p218 = scmp.eq.s32.totalorder %s217, 0
      %s220 = sadd.s32 %s219, 1
      %s221 = scalar_select %p218, %s219, %s220
      %p224 = pneg %p218
      %p225 = scmp.eq.s32.totalorder %s20, 3
      %p226 = por %p224, %p225
      %p227 = scmp.ne.s32.totalorder %s219, %s222
      %p228 = scmp.eq.s32.totalorder %s20, 0
      %p229 = por %p227, %p228
      %p230 = scmp.ne.s32.totalorder %s219, %s222
      %p231 = scmp.eq.s32.totalorder %s25, 3
      %p232 = por %p230, %p231
      %p233 = scmp.ne.s32.totalorder %s222, %s223
      %p234 = scmp.eq.s32.totalorder %s25, 0
      %p235 = por %p233, %p234
      %p236 = scmp.ne.s32.totalorder %s222, %s223
      %p237 = scmp.eq.s32.totalorder %s26, 3
      %p238 = por %p236, %p237
      %p240 = scmp.ne.s32.totalorder %s223, %s239
      %p241 = scmp.eq.s32.totalorder %s26, 0
      %p242 = por %p240, %p241
      %p243 = scmp.le.s32.totalorder 1, %s20
      %p244 = scmp.lt.s32.totalorder %s20, 5
      %p245 = pnand %p243, %p244
      %p246 = pneg %p245
      // Predicated region
      $region9: #{tpu_custom_call.1} parent=5 // pred_check
        _
      $region10: #{tpu_custom_call.1} parent=5 // pred_check_branch
        %248 = sbr.rel (%p245) target = $region12
      $region11: #{tpu_custom_call.1} parent=5 // pred_region
        %s249 = ssub.s32 %s20, 1
        // Predicated region
        $region13: #{tpu_custom_call.1} parent=11 // pred_check
          %p250 = pneg %p81
        $region14: #{tpu_custom_call.1} parent=11 // pred_check_branch
          %252 = sbr.rel (%p250) target = $region16
        $region15: #{tpu_custom_call.1} parent=11 // pred_region
          _
        $region16: #{tpu_custom_call.1} parent=11 // pred_fallthru
          _
        // Predicated region
        $region17: #{tpu_custom_call.1} parent=11 // pred_check
          %p253 = pneg %p102
        $region18: #{tpu_custom_call.1} parent=11 // pred_check_branch
          %255 = sbr.rel (%p253) target = $region20
        $region19: #{tpu_custom_call.1} parent=11 // pred_region
          _
        $region20: #{tpu_custom_call.1} parent=11 // pred_fallthru
          _
        // Predicated region
        $region21: #{tpu_custom_call.1} parent=11 // pred_check
          %p256 = pneg %p123
        $region22: #{tpu_custom_call.1} parent=11 // pred_check_branch
          %258 = sbr.rel (%p256) target = $region24
        $region23: #{tpu_custom_call.1} parent=11 // pred_region
          _
        $region24: #{tpu_custom_call.1} parent=11 // pred_fallthru
          _
        // Predicated region
        $region25: #{tpu_custom_call.1} parent=11 // pred_check
          %p259 = pneg %p144
        $region26: #{tpu_custom_call.1} parent=11 // pred_check_branch
          %261 = sbr.rel (%p259) target = $region28
        $region27: #{tpu_custom_call.1} parent=11 // pred_region
          _
        $region28: #{tpu_custom_call.1} parent=11 // pred_fallthru
          _
        // Predicated region
        $region29: #{tpu_custom_call.1} parent=11 // pred_check
          %p262 = pneg %p165
        $region30: #{tpu_custom_call.1} parent=11 // pred_check_branch
          %264 = sbr.rel (%p262) target = $region32
        $region31: #{tpu_custom_call.1} parent=11 // pred_region
          _
        $region32: #{tpu_custom_call.1} parent=11 // pred_fallthru
          _
        // Predicated region
        $region33: #{tpu_custom_call.1} parent=11 // pred_check
          %p265 = pneg %p186
        $region34: #{tpu_custom_call.1} parent=11 // pred_check_branch
          %267 = sbr.rel (%p265) target = $region36
        $region35: #{tpu_custom_call.1} parent=11 // pred_region
          _
        $region36: #{tpu_custom_call.1} parent=11 // pred_fallthru
          _
        // Predicated region
        $region37: #{tpu_custom_call.1} parent=11 // pred_check
          %p268 = pneg %p207
        $region38: #{tpu_custom_call.1} parent=11 // pred_check_branch
          %270 = sbr.rel (%p268) target = $region40
        $region39: #{tpu_custom_call.1} parent=11 // pred_region
          _
        $region40: #{tpu_custom_call.1} parent=11 // pred_fallthru
          _
      $region12: #{tpu_custom_call.1} parent=5 // pred_fallthru
        _
      %p271 = scmp.lt.s32.totalorder %s20, 4
      // Predicated region
      $region41: #{tpu_custom_call.1} parent=5 // pred_check
        %p272 = pneg %p271
      $region42: #{tpu_custom_call.1} parent=5 // pred_check_branch
        %274 = sbr.rel (%p272) target = $region44
      $region43: #{tpu_custom_call.1} parent=5 // pred_region
        // Predicated region
        $region45: #{tpu_custom_call.1} parent=43 // pred_check
          %p275 = pneg %p54
        $region46: #{tpu_custom_call.1} parent=43 // pred_check_branch
          %277 = sbr.rel (%p275) target = $region48
        $region47: #{tpu_custom_call.1} parent=43 // pred_region
          %s278 = sand.u32 %s44, 1
          %s279 = scalar_lea.sflag [#allocation3], %s278
          %s280 = sand.u32 %s44, 1
          %s281 = smul.addr %s280, 96
          %s282 = scalar_lea.vmem [#allocation2], %s281
          %s284 = ssub.s32 1536, 1536
          %285 = vsyncadd %s279, %s284
          %s286 = smul.addr %s28, 12
          %s287 = smul.addr %s27, 24
          %s288 = sadd.s32 %s286, %s287
          %s289 = smul.addr %s288, 128
          %s290 = scalar_lea.hbm %s0, %s289
          %s292 = sshll.u32 %s282, 4
          %s293 = int_to_ptr.vmem [resolvable:$true] %s292
          %295 = dma.hbm_to_vmem [thread:$0]  %s290, 1536, %s293, %s279
        $region48: #{tpu_custom_call.1} parent=43 // pred_fallthru
          _
      $region44: #{tpu_custom_call.1} parent=5 // pred_fallthru
        _
      %p296 = scmp.le.s32.totalorder 1, %s20
      %p297 = scmp.lt.s32.totalorder %s20, 5
      %p298 = pnand %p296, %p297
      %p299 = pneg %p298
      // Predicated region
      $region49: #{tpu_custom_call.1} parent=5 // pred_check
        _
      $region50: #{tpu_custom_call.1} parent=5 // pred_check_branch
        %301 = sbr.rel (%p298) target = $region52
      $region51: #{tpu_custom_call.1} parent=5 // pred_region
        %s302 = ssub.s32 %s20, 1
        %s303 = sand.u32 %s47, 1
        %s304 = scalar_lea.sflag [#allocation3], %s303
        %s305 = sand.u32 %s47, 1
        %s306 = smul.addr %s305, 96
        %s307 = scalar_lea.vmem [#allocation2], %s306
        // Predicated region
        $region53: #{tpu_custom_call.1} parent=51 // pred_check
          %p308 = pneg %p60
        $region54: #{tpu_custom_call.1} parent=51 // pred_check_branch
          %310 = sbr.rel (%p308) target = $region56
        $region55: #{tpu_custom_call.1} parent=51 // pred_region
          %311 = dma.done %s304, 1536
        $region56: #{tpu_custom_call.1} parent=51 // pred_fallthru
          _
        %s312 = sand.u32 %s47, 1
        %s313 = scalar_lea.sflag [#allocation3], %s312
        %s314 = sand.u32 %s47, 1
        %s315 = smul.addr %s314, 96
        %s316 = scalar_lea.vmem [#allocation2], %s315
        %p317 = pneg %p60
        %p318 = pneg %p57
        %p319 = pneg %p81
        %p320 = pneg %p78
        %p321 = pneg %p102
        %p322 = pneg %p99
        %p323 = pneg %p123
        %p324 = pneg %p120
        %p325 = pneg %p144
        %p326 = pneg %p141
        %p327 = pneg %p165
        %p328 = pneg %p162
        %p329 = pneg %p186
        %p330 = pneg %p183
        %p331 = pneg %p207
        %p332 = pneg %p204
        %p333 = pneg %p235
        %p334 = pneg %p232
        %s335 = sand.u32 %s222, 1
        %s336 = scalar_lea.sflag [#allocation4], %s335
        %s337 = sand.u32 %s222, 1
        %s338 = smul.addr %s337, 64
        %s339 = scalar_lea.vmem [#allocation5], %s338
        %s340 = smul.u32 8, %s30
        %v342 = vld [vmem:[%s307] sm:$0xff]
        %v343 = vld [vmem:[%s307 + $0x8] sm:$0xff]
        %v344 = vld [vmem:[%s307 + $0x10] sm:$0xff]
        %v345 = vld [vmem:[%s307 + $0x18] sm:$0xff]
        %v346 = vld [vmem:[%s307 + $0x20] sm:$0xff]
        %v347 = vld [vmem:[%s307 + $0x28] sm:$0xff]
        %v348 = vld [vmem:[%s307 + $0x30] sm:$0xff]
        %v349 = vld [vmem:[%s307 + $0x38] sm:$0xff]
        %v350 = vld [vmem:[%s307 + $0x40] sm:$0xff]
        %v351 = vld [vmem:[%s307 + $0x48] sm:$0xff]
        %v352 = vld [vmem:[%s307 + $0x50] sm:$0xff]
        %v353 = vld [vmem:[%s307 + $0x58] sm:$0xff]
        %v354 = vld [vmem:[%s1] sm:$0xff]
        %356 = vset.pattern.permute.xlu0 4
        %357 = vperm.xlu0 %356, %v354
        %v358 = vpop.permute.xlu0 %357
        %v360 = vmul.f32 %v358, %v344
        %v361 = vmul.f32 %v358, %v345
        %v362 = vmul.f32 %v358, %v346
        %v363 = vmul.f32 %v358, %v347
        %v364 = vmul.f32 %v358, %v348
        %v365 = vmul.f32 %v358, %v349
        %v366 = vmul.f32 %v358, %v350
        %v367 = vmul.f32 %v358, %v351
        %v368 = vld [vmem:[%s3] sm:$0xff]
        %370 = vset.pattern.permute.xlu0 0
        %371 = vperm.xlu0 %370, %v368
        %v372 = vpop.permute.xlu0 %371
        %v374 = vadd.f32 %v360, %v372
        %v375 = vadd.f32 %v361, %v372
        %v376 = vadd.f32 %v362, %v372
        %v377 = vadd.f32 %v363, %v372
        %v378 = vadd.f32 %v364, %v372
        %v379 = vadd.f32 %v365, %v372
        %v380 = vadd.f32 %v366, %v372
        %v381 = vadd.f32 %v367, %v372
        %v382 = vld [vmem:[%s2] sm:$0xff]
        %384 = vset.pattern.permute.xlu0 4
        %385 = vperm.xlu0 %384, %v382
        %v386 = vpop.permute.xlu0 %385
        %v388 = vmul.f32 %v386, %v344
        %v389 = vmul.f32 %v386, %v345
        %v390 = vmul.f32 %v386, %v346
        %v391 = vmul.f32 %v386, %v347
        %v392 = vmul.f32 %v386, %v348
        %v393 = vmul.f32 %v386, %v349
        %v394 = vmul.f32 %v386, %v350
        %v395 = vmul.f32 %v386, %v351
        %v396 = vld [vmem:[%s4] sm:$0xff]
        %398 = vset.pattern.permute.xlu0 0
        %399 = vperm.xlu0 %398, %v396
        %v400 = vpop.permute.xlu0 %399
        %v402 = vadd.f32 %v388, %v400
        %v403 = vadd.f32 %v389, %v400
        %v404 = vadd.f32 %v390, %v400
        %v405 = vadd.f32 %v391, %v400
        %v406 = vadd.f32 %v392, %v400
        %v407 = vadd.f32 %v393, %v400
        %v408 = vadd.f32 %v394, %v400
        %v409 = vadd.f32 %v395, %v400
        %410 = vset.pattern.permute.xlu0 0
        %411 = vperm.xlu0 %410, %v354
        %v412 = vpop.permute.xlu0 %411
        %v414 = vmul.f32 %v412, %v342
        %v415 = vmul.f32 %v412, %v343
        %v416 = vmul.f32 %v412, %v344
        %v417 = vmul.f32 %v412, %v345
        %v418 = vmul.f32 %v412, %v346
        %v419 = vmul.f32 %v412, %v347
        %v420 = vmul.f32 %v412, %v348
        %v421 = vmul.f32 %v412, %v349
        %v422 = vmul.f32 %v412, %v350
        %432 = vrot.lane.b32.xlu0 %v414, 1
        %v433 = vpop.permute.xlu0 %432
        %434 = vrot.lane.b32.xlu0 %v415, 1
        %v435 = vpop.permute.xlu0 %434
        %436 = vrot.lane.b32.xlu0 %v416, 1
        %v437 = vpop.permute.xlu0 %436
        %438 = vrot.lane.b32.xlu0 %v417, 1
        %v439 = vpop.permute.xlu0 %438
        %440 = vrot.lane.b32.xlu0 %v418, 1
        %v441 = vpop.permute.xlu0 %440
        %442 = vrot.lane.b32.xlu0 %v419, 1
        %v443 = vpop.permute.xlu0 %442
        %444 = vrot.lane.b32.xlu0 %v420, 1
        %v445 = vpop.permute.xlu0 %444
        %446 = vrot.lane.b32.xlu0 %v421, 1
        %v447 = vpop.permute.xlu0 %446
        %448 = vrot.lane.b32.xlu0 %v422, 1
        %v449 = vpop.permute.xlu0 %448
        %vm450 = vcmask 7168
        %v451 = vsel %vm450, %v433, %v435
        %v452 = vsel %vm450, %v435, %v437
        %v453 = vsel %vm450, %v437, %v439
        %v454 = vsel %vm450, %v439, %v441
        %v455 = vsel %vm450, %v441, %v443
        %v456 = vsel %vm450, %v443, %v445
        %v457 = vsel %vm450, %v445, %v447
        %v458 = vsel %vm450, %v447, %v449
        %v467 = vadd.f32 %v374, %v451
        %v468 = vadd.f32 %v375, %v452
        %v469 = vadd.f32 %v376, %v453
        %v470 = vadd.f32 %v377, %v454
        %v471 = vadd.f32 %v378, %v455
        %v472 = vadd.f32 %v379, %v456
        %v473 = vadd.f32 %v380, %v457
        %v474 = vadd.f32 %v381, %v458
        %475 = vset.pattern.permute.xlu0 0
        %476 = vperm.xlu0 %475, %v382
        %v477 = vpop.permute.xlu0 %476
        %v479 = vmul.f32 %v477, %v342
        %v480 = vmul.f32 %v477, %v343
        %v481 = vmul.f32 %v477, %v344
        %v482 = vmul.f32 %v477, %v345
        %v483 = vmul.f32 %v477, %v346
        %v484 = vmul.f32 %v477, %v347
        %v485 = vmul.f32 %v477, %v348
        %v486 = vmul.f32 %v477, %v349
        %v487 = vmul.f32 %v477, %v350
        %497 = vrot.lane.b32.xlu0 %v479, 1
        %v498 = vpop.permute.xlu0 %497
        %499 = vrot.lane.b32.xlu0 %v480, 1
        %v500 = vpop.permute.xlu0 %499
        %501 = vrot.lane.b32.xlu0 %v481, 1
        %v502 = vpop.permute.xlu0 %501
        %503 = vrot.lane.b32.xlu0 %v482, 1
        %v504 = vpop.permute.xlu0 %503
        %505 = vrot.lane.b32.xlu0 %v483, 1
        %v506 = vpop.permute.xlu0 %505
        %507 = vrot.lane.b32.xlu0 %v484, 1
        %v508 = vpop.permute.xlu0 %507
        %509 = vrot.lane.b32.xlu0 %v485, 1
        %v510 = vpop.permute.xlu0 %509
        %511 = vrot.lane.b32.xlu0 %v486, 1
        %v512 = vpop.permute.xlu0 %511
        %513 = vrot.lane.b32.xlu0 %v487, 1
        %v514 = vpop.permute.xlu0 %513
        %v515 = vsel %vm450, %v498, %v500
        %v516 = vsel %vm450, %v500, %v502
        %v517 = vsel %vm450, %v502, %v504
        %v518 = vsel %vm450, %v504, %v506
        %v519 = vsel %vm450, %v506, %v508
        %v520 = vsel %vm450, %v508, %v510
        %v521 = vsel %vm450, %v510, %v512
        %v522 = vsel %vm450, %v512, %v514
        %v531 = vadd.f32 %v402, %v515
        %v532 = vadd.f32 %v403, %v516
        %v533 = vadd.f32 %v404, %v517
        %v534 = vadd.f32 %v405, %v518
        %v535 = vadd.f32 %v406, %v519
        %v536 = vadd.f32 %v407, %v520
        %v537 = vadd.f32 %v408, %v521
        %v538 = vadd.f32 %v409, %v522
        %539 = vset.pattern.permute.xlu0 1
        %540 = vperm.xlu0 %539, %v354
        %v541 = vpop.permute.xlu0 %540
        %v543 = vmul.f32 %v541, %v343
        %v544 = vmul.f32 %v541, %v344
        %v545 = vmul.f32 %v541, %v345
        %v546 = vmul.f32 %v541, %v346
        %v547 = vmul.f32 %v541, %v347
        %v548 = vmul.f32 %v541, %v348
        %v549 = vmul.f32 %v541, %v349
        %v550 = vmul.f32 %v541, %v350
        %v551 = vadd.f32 %v467, %v543
        %v552 = vadd.f32 %v468, %v544
        %v553 = vadd.f32 %v469, %v545
        %v554 = vadd.f32 %v470, %v546
        %v555 = vadd.f32 %v471, %v547
        %v556 = vadd.f32 %v472, %v548
        %v557 = vadd.f32 %v473, %v549
        %v558 = vadd.f32 %v474, %v550
        %559 = vset.pattern.permute.xlu0 1
        %560 = vperm.xlu0 %559, %v382
        %v561 = vpop.permute.xlu0 %560
        %v563 = vmul.f32 %v561, %v343
        %v564 = vmul.f32 %v561, %v344
        %v565 = vmul.f32 %v561, %v345
        %v566 = vmul.f32 %v561, %v346
        %v567 = vmul.f32 %v561, %v347
        %v568 = vmul.f32 %v561, %v348
        %v569 = vmul.f32 %v561, %v349
        %v570 = vmul.f32 %v561, %v350
        %v571 = vadd.f32 %v531, %v563
        %v572 = vadd.f32 %v532, %v564
        %v573 = vadd.f32 %v533, %v565
        %v574 = vadd.f32 %v534, %v566
        %v575 = vadd.f32 %v535, %v567
        %v576 = vadd.f32 %v536, %v568
        %v577 = vadd.f32 %v537, %v569
        %v578 = vadd.f32 %v538, %v570
        %579 = vset.pattern.permute.xlu0 2
        %580 = vperm.xlu0 %579, %v354
        %v581 = vpop.permute.xlu0 %580
        %v583 = vmul.f32 %v581, %v343
        %v584 = vmul.f32 %v581, %v344
        %v585 = vmul.f32 %v581, %v345
        %v586 = vmul.f32 %v581, %v346
        %v587 = vmul.f32 %v581, %v347
        %v588 = vmul.f32 %v581, %v348
        %v589 = vmul.f32 %v581, %v349
        %v590 = vmul.f32 %v581, %v350
        %v591 = vmul.f32 %v581, %v351
        %601 = vrot.lane.b32.xlu0 %v583, 127
        %v602 = vpop.permute.xlu0 %601
        %603 = vrot.lane.b32.xlu0 %v584, 127
        %v604 = vpop.permute.xlu0 %603
        %605 = vrot.lane.b32.xlu0 %v585, 127
        %v606 = vpop.permute.xlu0 %605
        %607 = vrot.lane.b32.xlu0 %v586, 127
        %v608 = vpop.permute.xlu0 %607
        %609 = vrot.lane.b32.xlu0 %v587, 127
        %v610 = vpop.permute.xlu0 %609
        %611 = vrot.lane.b32.xlu0 %v588, 127
        %v612 = vpop.permute.xlu0 %611
        %613 = vrot.lane.b32.xlu0 %v589, 127
        %v614 = vpop.permute.xlu0 %613
        %615 = vrot.lane.b32.xlu0 %v590, 127
        %v616 = vpop.permute.xlu0 %615
        %617 = vrot.lane.b32.xlu0 %v591, 127
        %v618 = vpop.permute.xlu0 %617
        %vm619 = vcmask 1039360
        %v620 = vsel %vm619, %v602, %v604
        %v621 = vsel %vm619, %v604, %v606
        %v622 = vsel %vm619, %v606, %v608
        %v623 = vsel %vm619, %v608, %v610
        %v624 = vsel %vm619, %v610, %v612
        %v625 = vsel %vm619, %v612, %v614
        %v626 = vsel %vm619, %v614, %v616
        %v627 = vsel %vm619, %v616, %v618
        %v636 = vadd.f32 %v551, %v620
        %v637 = vadd.f32 %v552, %v621
        %v638 = vadd.f32 %v553, %v622
        %v639 = vadd.f32 %v554, %v623
        %v640 = vadd.f32 %v555, %v624
        %v641 = vadd.f32 %v556, %v625
        %v642 = vadd.f32 %v557, %v626
        %v643 = vadd.f32 %v558, %v627
        %644 = vset.pattern.permute.xlu0 2
        %645 = vperm.xlu0 %644, %v382
        %v646 = vpop.permute.xlu0 %645
        %v648 = vmul.f32 %v646, %v343
        %v649 = vmul.f32 %v646, %v344
        %v650 = vmul.f32 %v646, %v345
        %v651 = vmul.f32 %v646, %v346
        %v652 = vmul.f32 %v646, %v347
        %v653 = vmul.f32 %v646, %v348
        %v654 = vmul.f32 %v646, %v349
        %v655 = vmul.f32 %v646, %v350
        %v656 = vmul.f32 %v646, %v351
        %666 = vrot.lane.b32.xlu0 %v648, 127
        %v667 = vpop.permute.xlu0 %666
        %668 = vrot.lane.b32.xlu0 %v649, 127
        %v669 = vpop.permute.xlu0 %668
        %670 = vrot.lane.b32.xlu0 %v650, 127
        %v671 = vpop.permute.xlu0 %670
        %672 = vrot.lane.b32.xlu0 %v651, 127
        %v673 = vpop.permute.xlu0 %672
        %674 = vrot.lane.b32.xlu0 %v652, 127
        %v675 = vpop.permute.xlu0 %674
        %676 = vrot.lane.b32.xlu0 %v653, 127
        %v677 = vpop.permute.xlu0 %676
        %678 = vrot.lane.b32.xlu0 %v654, 127
        %v679 = vpop.permute.xlu0 %678
        %680 = vrot.lane.b32.xlu0 %v655, 127
        %v681 = vpop.permute.xlu0 %680
        %682 = vrot.lane.b32.xlu0 %v656, 127
        %v683 = vpop.permute.xlu0 %682
        %v684 = vsel %vm619, %v667, %v669
        %v685 = vsel %vm619, %v669, %v671
        %v686 = vsel %vm619, %v671, %v673
        %v687 = vsel %vm619, %v673, %v675
        %v688 = vsel %vm619, %v675, %v677
        %v689 = vsel %vm619, %v677, %v679
        %v690 = vsel %vm619, %v679, %v681
        %v691 = vsel %vm619, %v681, %v683
        %v700 = vadd.f32 %v571, %v684
        %v701 = vadd.f32 %v572, %v685
        %v702 = vadd.f32 %v573, %v686
        %v703 = vadd.f32 %v574, %v687
        %v704 = vadd.f32 %v575, %v688
        %v705 = vadd.f32 %v576, %v689
        %v706 = vadd.f32 %v577, %v690
        %v707 = vadd.f32 %v578, %v691
        %708 = vset.pattern.permute.xlu0 3
        %709 = vperm.xlu0 %708, %v354
        %v710 = vpop.permute.xlu0 %709
        %v712 = vmul.f32 %v710, %v343
        %v713 = vmul.f32 %v710, %v344
        %v714 = vmul.f32 %v710, %v345
        %v715 = vmul.f32 %v710, %v346
        %v716 = vmul.f32 %v710, %v347
        %v717 = vmul.f32 %v710, %v348
        %v718 = vmul.f32 %v710, %v349
        %v719 = vmul.f32 %v710, %v350
        %v720 = vmul.f32 %v710, %v351
        %730 = vrot.lane.b32.xlu0 %v712, 1
        %v731 = vpop.permute.xlu0 %730
        %732 = vrot.lane.b32.xlu0 %v713, 1
        %v733 = vpop.permute.xlu0 %732
        %734 = vrot.lane.b32.xlu0 %v714, 1
        %v735 = vpop.permute.xlu0 %734
        %736 = vrot.lane.b32.xlu0 %v715, 1
        %v737 = vpop.permute.xlu0 %736
        %738 = vrot.lane.b32.xlu0 %v716, 1
        %v739 = vpop.permute.xlu0 %738
        %740 = vrot.lane.b32.xlu0 %v717, 1
        %v741 = vpop.permute.xlu0 %740
        %742 = vrot.lane.b32.xlu0 %v718, 1
        %v743 = vpop.permute.xlu0 %742
        %744 = vrot.lane.b32.xlu0 %v719, 1
        %v745 = vpop.permute.xlu0 %744
        %746 = vrot.lane.b32.xlu0 %v720, 1
        %v747 = vpop.permute.xlu0 %746
        %v748 = vsel %vm450, %v731, %v733
        %v749 = vsel %vm450, %v733, %v735
        %v750 = vsel %vm450, %v735, %v737
        %v751 = vsel %vm450, %v737, %v739
        %v752 = vsel %vm450, %v739, %v741
        %v753 = vsel %vm450, %v741, %v743
        %v754 = vsel %vm450, %v743, %v745
        %v755 = vsel %vm450, %v745, %v747
        %v764 = vadd.f32 %v636, %v748
        %v765 = vadd.f32 %v637, %v749
        %v766 = vadd.f32 %v638, %v750
        %v767 = vadd.f32 %v639, %v751
        %v768 = vadd.f32 %v640, %v752
        %v769 = vadd.f32 %v641, %v753
        %v770 = vadd.f32 %v642, %v754
        %v771 = vadd.f32 %v643, %v755
        %772 = vset.pattern.permute.xlu0 3
        %773 = vperm.xlu0 %772, %v382
        %v774 = vpop.permute.xlu0 %773
        %v776 = vmul.f32 %v774, %v343
        %v777 = vmul.f32 %v774, %v344
        %v778 = vmul.f32 %v774, %v345
        %v779 = vmul.f32 %v774, %v346
        %v780 = vmul.f32 %v774, %v347
        %v781 = vmul.f32 %v774, %v348
        %v782 = vmul.f32 %v774, %v349
        %v783 = vmul.f32 %v774, %v350
        %v784 = vmul.f32 %v774, %v351
        %794 = vrot.lane.b32.xlu0 %v776, 1
        %v795 = vpop.permute.xlu0 %794
        %796 = vrot.lane.b32.xlu0 %v777, 1
        %v797 = vpop.permute.xlu0 %796
        %798 = vrot.lane.b32.xlu0 %v778, 1
        %v799 = vpop.permute.xlu0 %798
        %800 = vrot.lane.b32.xlu0 %v779, 1
        %v801 = vpop.permute.xlu0 %800
        %802 = vrot.lane.b32.xlu0 %v780, 1
        %v803 = vpop.permute.xlu0 %802
        %804 = vrot.lane.b32.xlu0 %v781, 1
        %v805 = vpop.permute.xlu0 %804
        %806 = vrot.lane.b32.xlu0 %v782, 1
        %v807 = vpop.permute.xlu0 %806
        %808 = vrot.lane.b32.xlu0 %v783, 1
        %v809 = vpop.permute.xlu0 %808
        %810 = vrot.lane.b32.xlu0 %v784, 1
        %v811 = vpop.permute.xlu0 %810
        %v812 = vsel %vm450, %v795, %v797
        %v813 = vsel %vm450, %v797, %v799
        %v814 = vsel %vm450, %v799, %v801
        %v815 = vsel %vm450, %v801, %v803
        %v816 = vsel %vm450, %v803, %v805
        %v817 = vsel %vm450, %v805, %v807
        %v818 = vsel %vm450, %v807, %v809
        %v819 = vsel %vm450, %v809, %v811
        %v828 = vadd.f32 %v700, %v812
        %v829 = vadd.f32 %v701, %v813
        %v830 = vadd.f32 %v702, %v814
        %v831 = vadd.f32 %v703, %v815
        %v832 = vadd.f32 %v704, %v816
        %v833 = vadd.f32 %v705, %v817
        %v834 = vadd.f32 %v706, %v818
        %v835 = vadd.f32 %v707, %v819
        %836 = vset.pattern.permute.xlu0 5
        %837 = vperm.xlu0 %836, %v354
        %v838 = vpop.permute.xlu0 %837
        %v840 = vmul.f32 %v838, %v344
        %v841 = vmul.f32 %v838, %v345
        %v842 = vmul.f32 %v838, %v346
        %v843 = vmul.f32 %v838, %v347
        %v844 = vmul.f32 %v838, %v348
        %v845 = vmul.f32 %v838, %v349
        %v846 = vmul.f32 %v838, %v350
        %v847 = vmul.f32 %v838, %v351
        %v848 = vmul.f32 %v838, %v352
        %858 = vrot.lane.b32.xlu0 %v840, 127
        %v859 = vpop.permute.xlu0 %858
        %860 = vrot.lane.b32.xlu0 %v841, 127
        %v861 = vpop.permute.xlu0 %860
        %862 = vrot.lane.b32.xlu0 %v842, 127
        %v863 = vpop.permute.xlu0 %862
        %864 = vrot.lane.b32.xlu0 %v843, 127
        %v865 = vpop.permute.xlu0 %864
        %866 = vrot.lane.b32.xlu0 %v844, 127
        %v867 = vpop.permute.xlu0 %866
        %868 = vrot.lane.b32.xlu0 %v845, 127
        %v869 = vpop.permute.xlu0 %868
        %870 = vrot.lane.b32.xlu0 %v846, 127
        %v871 = vpop.permute.xlu0 %870
        %872 = vrot.lane.b32.xlu0 %v847, 127
        %v873 = vpop.permute.xlu0 %872
        %874 = vrot.lane.b32.xlu0 %v848, 127
        %v875 = vpop.permute.xlu0 %874
        %v876 = vsel %vm619, %v859, %v861
        %v877 = vsel %vm619, %v861, %v863
        %v878 = vsel %vm619, %v863, %v865
        %v879 = vsel %vm619, %v865, %v867
        %v880 = vsel %vm619, %v867, %v869
        %v881 = vsel %vm619, %v869, %v871
        %v882 = vsel %vm619, %v871, %v873
        %v883 = vsel %vm619, %v873, %v875
        %v892 = vadd.f32 %v764, %v876
        %v893 = vadd.f32 %v765, %v877
        %v894 = vadd.f32 %v766, %v878
        %v895 = vadd.f32 %v767, %v879
        %v896 = vadd.f32 %v768, %v880
        %v897 = vadd.f32 %v769, %v881
        %v898 = vadd.f32 %v770, %v882
        %v899 = vadd.f32 %v771, %v883
        %900 = vset.pattern.permute.xlu0 5
        %901 = vperm.xlu0 %900, %v382
        %v902 = vpop.permute.xlu0 %901
        %v904 = vmul.f32 %v902, %v344
        %v905 = vmul.f32 %v902, %v345
        %v906 = vmul.f32 %v902, %v346
        %v907 = vmul.f32 %v902, %v347
        %v908 = vmul.f32 %v902, %v348
        %v909 = vmul.f32 %v902, %v349
        %v910 = vmul.f32 %v902, %v350
        %v911 = vmul.f32 %v902, %v351
        %v912 = vmul.f32 %v902, %v352
        %922 = vrot.lane.b32.xlu0 %v904, 127
        %v923 = vpop.permute.xlu0 %922
        %924 = vrot.lane.b32.xlu0 %v905, 127
        %v925 = vpop.permute.xlu0 %924
        %926 = vrot.lane.b32.xlu0 %v906, 127
        %v927 = vpop.permute.xlu0 %926
        %928 = vrot.lane.b32.xlu0 %v907, 127
        %v929 = vpop.permute.xlu0 %928
        %930 = vrot.lane.b32.xlu0 %v908, 127
        %v931 = vpop.permute.xlu0 %930
        %932 = vrot.lane.b32.xlu0 %v909, 127
        %v933 = vpop.permute.xlu0 %932
        %934 = vrot.lane.b32.xlu0 %v910, 127
        %v935 = vpop.permute.xlu0 %934
        %936 = vrot.lane.b32.xlu0 %v911, 127
        %v937 = vpop.permute.xlu0 %936
        %938 = vrot.lane.b32.xlu0 %v912, 127
        %v939 = vpop.permute.xlu0 %938
        %v940 = vsel %vm619, %v923, %v925
        %v941 = vsel %vm619, %v925, %v927
        %v942 = vsel %vm619, %v927, %v929
        %v943 = vsel %vm619, %v929, %v931
        %v944 = vsel %vm619, %v931, %v933
        %v945 = vsel %vm619, %v933, %v935
        %v946 = vsel %vm619, %v935, %v937
        %v947 = vsel %vm619, %v937, %v939
        %v956 = vadd.f32 %v828, %v940
        %v957 = vadd.f32 %v829, %v941
        %v958 = vadd.f32 %v830, %v942
        %v959 = vadd.f32 %v831, %v943
        %v960 = vadd.f32 %v832, %v944
        %v961 = vadd.f32 %v833, %v945
        %v962 = vadd.f32 %v834, %v946
        %v963 = vadd.f32 %v835, %v947
        %964 = vset.pattern.permute.xlu0 6
        %965 = vperm.xlu0 %964, %v354
        %v966 = vpop.permute.xlu0 %965
        %v968 = vmul.f32 %v966, %v344
        %v969 = vmul.f32 %v966, %v345
        %v970 = vmul.f32 %v966, %v346
        %v971 = vmul.f32 %v966, %v347
        %v972 = vmul.f32 %v966, %v348
        %v973 = vmul.f32 %v966, %v349
        %v974 = vmul.f32 %v966, %v350
        %v975 = vmul.f32 %v966, %v351
        %v976 = vmul.f32 %v966, %v352
        %986 = vrot.lane.b32.xlu0 %v968, 1
        %v987 = vpop.permute.xlu0 %986
        %988 = vrot.lane.b32.xlu0 %v969, 1
        %v989 = vpop.permute.xlu0 %988
        %990 = vrot.lane.b32.xlu0 %v970, 1
        %v991 = vpop.permute.xlu0 %990
        %992 = vrot.lane.b32.xlu0 %v971, 1
        %v993 = vpop.permute.xlu0 %992
        %994 = vrot.lane.b32.xlu0 %v972, 1
        %v995 = vpop.permute.xlu0 %994
        %996 = vrot.lane.b32.xlu0 %v973, 1
        %v997 = vpop.permute.xlu0 %996
        %998 = vrot.lane.b32.xlu0 %v974, 1
        %v999 = vpop.permute.xlu0 %998
        %1000 = vrot.lane.b32.xlu0 %v975, 1
        %v1001 = vpop.permute.xlu0 %1000
        %1002 = vrot.lane.b32.xlu0 %v976, 1
        %v1003 = vpop.permute.xlu0 %1002
        %v1004 = vsel %vm450, %v987, %v989
        %v1005 = vsel %vm450, %v989, %v991
        %v1006 = vsel %vm450, %v991, %v993
        %v1007 = vsel %vm450, %v993, %v995
        %v1008 = vsel %vm450, %v995, %v997
        %v1009 = vsel %vm450, %v997, %v999
        %v1010 = vsel %vm450, %v999, %v1001
        %v1011 = vsel %vm450, %v1001, %v1003
        %v1020 = vadd.f32 %v892, %v1004
        %v1021 = vadd.f32 %v893, %v1005
        %v1022 = vadd.f32 %v894, %v1006
        %v1023 = vadd.f32 %v895, %v1007
        %v1024 = vadd.f32 %v896, %v1008
        %v1025 = vadd.f32 %v897, %v1009
        %v1026 = vadd.f32 %v898, %v1010
        %v1027 = vadd.f32 %v899, %v1011
        %1028 = vset.pattern.permute.xlu0 6
        %1029 = vperm.xlu0 %1028, %v382
        %v1030 = vpop.permute.xlu0 %1029
        %v1032 = vmul.f32 %v1030, %v344
        %v1033 = vmul.f32 %v1030, %v345
        %v1034 = vmul.f32 %v1030, %v346
        %v1035 = vmul.f32 %v1030, %v347
        %v1036 = vmul.f32 %v1030, %v348
        %v1037 = vmul.f32 %v1030, %v349
        %v1038 = vmul.f32 %v1030, %v350
        %v1039 = vmul.f32 %v1030, %v351
        %v1040 = vmul.f32 %v1030, %v352
        %1050 = vrot.lane.b32.xlu0 %v1032, 1
        %v1051 = vpop.permute.xlu0 %1050
        %1052 = vrot.lane.b32.xlu0 %v1033, 1
        %v1053 = vpop.permute.xlu0 %1052
        %1054 = vrot.lane.b32.xlu0 %v1034, 1
        %v1055 = vpop.permute.xlu0 %1054
        %1056 = vrot.lane.b32.xlu0 %v1035, 1
        %v1057 = vpop.permute.xlu0 %1056
        %1058 = vrot.lane.b32.xlu0 %v1036, 1
        %v1059 = vpop.permute.xlu0 %1058
        %1060 = vrot.lane.b32.xlu0 %v1037, 1
        %v1061 = vpop.permute.xlu0 %1060
        %1062 = vrot.lane.b32.xlu0 %v1038, 1
        %v1063 = vpop.permute.xlu0 %1062
        %1064 = vrot.lane.b32.xlu0 %v1039, 1
        %v1065 = vpop.permute.xlu0 %1064
        %1066 = vrot.lane.b32.xlu0 %v1040, 1
        %v1067 = vpop.permute.xlu0 %1066
        %v1068 = vsel %vm450, %v1051, %v1053
        %v1069 = vsel %vm450, %v1053, %v1055
        %v1070 = vsel %vm450, %v1055, %v1057
        %v1071 = vsel %vm450, %v1057, %v1059
        %v1072 = vsel %vm450, %v1059, %v1061
        %v1073 = vsel %vm450, %v1061, %v1063
        %v1074 = vsel %vm450, %v1063, %v1065
        %v1075 = vsel %vm450, %v1065, %v1067
        %v1084 = vadd.f32 %v956, %v1068
        %v1085 = vadd.f32 %v957, %v1069
        %v1086 = vadd.f32 %v958, %v1070
        %v1087 = vadd.f32 %v959, %v1071
        %v1088 = vadd.f32 %v960, %v1072
        %v1089 = vadd.f32 %v961, %v1073
        %v1090 = vadd.f32 %v962, %v1074
        %v1091 = vadd.f32 %v963, %v1075
        %1092 = vset.pattern.permute.xlu0 7
        %1093 = vperm.xlu0 %1092, %v354
        %v1094 = vpop.permute.xlu0 %1093
        %v1096 = vmul.f32 %v1094, %v345
        %v1097 = vmul.f32 %v1094, %v346
        %v1098 = vmul.f32 %v1094, %v347
        %v1099 = vmul.f32 %v1094, %v348
        %v1100 = vmul.f32 %v1094, %v349
        %v1101 = vmul.f32 %v1094, %v350
        %v1102 = vmul.f32 %v1094, %v351
        %v1103 = vmul.f32 %v1094, %v352
        %v1104 = vadd.f32 %v1020, %v1096
        %v1105 = vadd.f32 %v1021, %v1097
        %v1106 = vadd.f32 %v1022, %v1098
        %v1107 = vadd.f32 %v1023, %v1099
        %v1108 = vadd.f32 %v1024, %v1100
        %v1109 = vadd.f32 %v1025, %v1101
        %v1110 = vadd.f32 %v1026, %v1102
        %v1111 = vadd.f32 %v1027, %v1103
        %1112 = vset.pattern.permute.xlu0 7
        %1113 = vperm.xlu0 %1112, %v382
        %v1114 = vpop.permute.xlu0 %1113
        %v1116 = vmul.f32 %v1114, %v345
        %v1117 = vmul.f32 %v1114, %v346
        %v1118 = vmul.f32 %v1114, %v347
        %v1119 = vmul.f32 %v1114, %v348
        %v1120 = vmul.f32 %v1114, %v349
        %v1121 = vmul.f32 %v1114, %v350
        %v1122 = vmul.f32 %v1114, %v351
        %v1123 = vmul.f32 %v1114, %v352
        %v1124 = vadd.f32 %v1084, %v1116
        %v1125 = vadd.f32 %v1085, %v1117
        %v1126 = vadd.f32 %v1086, %v1118
        %v1127 = vadd.f32 %v1087, %v1119
        %v1128 = vadd.f32 %v1088, %v1120
        %v1129 = vadd.f32 %v1089, %v1121
        %v1130 = vadd.f32 %v1090, %v1122
        %v1131 = vadd.f32 %v1091, %v1123
        %1132 = vset.pattern.permute.xlu0 8
        %1133 = vperm.xlu0 %1132, %v354
        %v1134 = vpop.permute.xlu0 %1133
        %v1136 = vmul.f32 %v1134, %v345
        %v1137 = vmul.f32 %v1134, %v346
        %v1138 = vmul.f32 %v1134, %v347
        %v1139 = vmul.f32 %v1134, %v348
        %v1140 = vmul.f32 %v1134, %v349
        %v1141 = vmul.f32 %v1134, %v350
        %v1142 = vmul.f32 %v1134, %v351
        %v1143 = vmul.f32 %v1134, %v352
        %v1144 = vmul.f32 %v1134, %v353
        %1154 = vrot.lane.b32.xlu0 %v1136, 127
        %v1155 = vpop.permute.xlu0 %1154
        %1156 = vrot.lane.b32.xlu0 %v1137, 127
        %v1157 = vpop.permute.xlu0 %1156
        %1158 = vrot.lane.b32.xlu0 %v1138, 127
        %v1159 = vpop.permute.xlu0 %1158
        %1160 = vrot.lane.b32.xlu0 %v1139, 127
        %v1161 = vpop.permute.xlu0 %1160
        %1162 = vrot.lane.b32.xlu0 %v1140, 127
        %v1163 = vpop.permute.xlu0 %1162
        %1164 = vrot.lane.b32.xlu0 %v1141, 127
        %v1165 = vpop.permute.xlu0 %1164
        %1166 = vrot.lane.b32.xlu0 %v1142, 127
        %v1167 = vpop.permute.xlu0 %1166
        %1168 = vrot.lane.b32.xlu0 %v1143, 127
        %v1169 = vpop.permute.xlu0 %1168
        %1170 = vrot.lane.b32.xlu0 %v1144, 127
        %v1171 = vpop.permute.xlu0 %1170
        %v1172 = vsel %vm619, %v1155, %v1157
        %v1173 = vsel %vm619, %v1157, %v1159
        %v1174 = vsel %vm619, %v1159, %v1161
        %v1175 = vsel %vm619, %v1161, %v1163
        %v1176 = vsel %vm619, %v1163, %v1165
        %v1177 = vsel %vm619, %v1165, %v1167
        %v1178 = vsel %vm619, %v1167, %v1169
        %v1179 = vsel %vm619, %v1169, %v1171
        %v1188 = vadd.f32 %v1104, %v1172
        %v1189 = vadd.f32 %v1105, %v1173
        %v1190 = vadd.f32 %v1106, %v1174
        %v1191 = vadd.f32 %v1107, %v1175
        %v1192 = vadd.f32 %v1108, %v1176
        %v1193 = vadd.f32 %v1109, %v1177
        %v1194 = vadd.f32 %v1110, %v1178
        %v1195 = vadd.f32 %v1111, %v1179
        %1196 = vset.pattern.permute.xlu0 8
        %1197 = vperm.xlu0 %1196, %v382
        %v1198 = vpop.permute.xlu0 %1197
        %v1200 = vmul.f32 %v1198, %v345
        %v1201 = vmul.f32 %v1198, %v346
        %v1202 = vmul.f32 %v1198, %v347
        %v1203 = vmul.f32 %v1198, %v348
        %v1204 = vmul.f32 %v1198, %v349
        %v1205 = vmul.f32 %v1198, %v350
        %v1206 = vmul.f32 %v1198, %v351
        %v1207 = vmul.f32 %v1198, %v352
        %v1208 = vmul.f32 %v1198, %v353
        %1218 = vrot.lane.b32.xlu0 %v1200, 127
        %v1219 = vpop.permute.xlu0 %1218
        %1220 = vrot.lane.b32.xlu0 %v1201, 127
        %v1221 = vpop.permute.xlu0 %1220
        %1222 = vrot.lane.b32.xlu0 %v1202, 127
        %v1223 = vpop.permute.xlu0 %1222
        %1224 = vrot.lane.b32.xlu0 %v1203, 127
        %v1225 = vpop.permute.xlu0 %1224
        %1226 = vrot.lane.b32.xlu0 %v1204, 127
        %v1227 = vpop.permute.xlu0 %1226
        %1228 = vrot.lane.b32.xlu0 %v1205, 127
        %v1229 = vpop.permute.xlu0 %1228
        %1230 = vrot.lane.b32.xlu0 %v1206, 127
        %v1231 = vpop.permute.xlu0 %1230
        %1232 = vrot.lane.b32.xlu0 %v1207, 127
        %v1233 = vpop.permute.xlu0 %1232
        %1234 = vrot.lane.b32.xlu0 %v1208, 127
        %v1235 = vpop.permute.xlu0 %1234
        %v1236 = vsel %vm619, %v1219, %v1221
        %v1237 = vsel %vm619, %v1221, %v1223
        %v1238 = vsel %vm619, %v1223, %v1225
        %v1239 = vsel %vm619, %v1225, %v1227
        %v1240 = vsel %vm619, %v1227, %v1229
        %v1241 = vsel %vm619, %v1229, %v1231
        %v1242 = vsel %vm619, %v1231, %v1233
        %v1243 = vsel %vm619, %v1233, %v1235
        %v1252 = vadd.f32 %v1124, %v1236
        %v1253 = vadd.f32 %v1125, %v1237
        %v1254 = vadd.f32 %v1126, %v1238
        %v1255 = vadd.f32 %v1127, %v1239
        %v1256 = vadd.f32 %v1128, %v1240
        %v1257 = vadd.f32 %v1129, %v1241
        %v1258 = vadd.f32 %v1130, %v1242
        %v1259 = vadd.f32 %v1131, %v1243
        %v1260 = vmax.f32 %v1188, 0.0
        %v1261 = vmax.f32 %v1189, 0.0
        %v1262 = vmax.f32 %v1190, 0.0
        %v1263 = vmax.f32 %v1191, 0.0
        %v1264 = vmax.f32 %v1192, 0.0
        %v1265 = vmax.f32 %v1193, 0.0
        %v1266 = vmax.f32 %v1194, 0.0
        %v1267 = vmax.f32 %v1195, 0.0
        %v1268 = vpack.c.bf16 %v1260, %v1260
        %v1269 = vpack.c.bf16 %v1261, %v1261
        %v1270 = vpack.c.bf16 %v1262, %v1262
        %v1271 = vpack.c.bf16 %v1263, %v1263
        %v1272 = vpack.c.bf16 %v1264, %v1264
        %v1273 = vpack.c.bf16 %v1265, %v1265
        %v1274 = vpack.c.bf16 %v1266, %v1266
        %v1275 = vpack.c.bf16 %v1267, %v1267
        %v1276 = vmax.f32 %v1252, 0.0
        %v1277 = vmax.f32 %v1253, 0.0
        %v1278 = vmax.f32 %v1254, 0.0
        %v1279 = vmax.f32 %v1255, 0.0
        %v1280 = vmax.f32 %v1256, 0.0
        %v1281 = vmax.f32 %v1257, 0.0
        %v1282 = vmax.f32 %v1258, 0.0
        %v1283 = vmax.f32 %v1259, 0.0
        %v1284 = vpack.c.bf16 %v1276, %v1276
        %v1285 = vpack.c.bf16 %v1277, %v1277
        %v1286 = vpack.c.bf16 %v1278, %v1278
        %v1287 = vpack.c.bf16 %v1279, %v1279
        %v1288 = vpack.c.bf16 %v1280, %v1280
        %v1289 = vpack.c.bf16 %v1281, %v1281
        %v1290 = vpack.c.bf16 %v1282, %v1282
        %v1291 = vpack.c.bf16 %v1283, %v1283
        %v1292 = vld [vmem:[%s5] sm:$0xff]
        %v1293 = vpack.c.bf16 %v1292, %v1292
        %v1294 = vld [vmem:[%s6] sm:$0xff]
        %v1295 = vpack.c.bf16 %v1294, %v1294
        %vm1296 = vcmask 64512
        %v1298 = vsel %vm1296, %v1295, 0
        %vm1300 = vcmask 1043456
        %v1302 = vsel %vm1300, %v1284, 0
        %v1305 = vsel %vm1300, %v1285, 0
        %v1308 = vsel %vm1300, %v1286, 0
        %v1311 = vsel %vm1300, %v1287, 0
        %v1314 = vsel %vm1300, %v1288, 0
        %v1317 = vsel %vm1300, %v1289, 0
        %v1320 = vsel %vm1300, %v1290, 0
        %v1323 = vsel %vm1300, %v1291, 0
        %1325 = vmatprep.subr.bf16.mxu0 %v1305
        %1326 = vmatpush1.bf16.msra.mxu0 %v1302
        %1327 = vmatprep.subr.bf16.mxu0 0
        %1328 = vmatpush1.bf16.msra.mxu0 0
        %1329 = vmatprep.subr.bf16.mxu0 0
        %1330 = vmatpush1.bf16.msra.mxu0 0
        %1331 = vmatprep.subr.bf16.mxu0 0
        %1332 = vmatpush1.bf16.msra.mxu0 0
        %1333 = vmatprep.subr.bf16.mxu0 0
        %1334 = vmatpush1.bf16.msra.mxu0 0
        %1335 = vmatprep.subr.bf16.mxu0 0
        %1336 = vmatpush1.bf16.msra.mxu0 0
        %1337 = vmatprep.subr.bf16.mxu0 0
        %1338 = vmatpush1.bf16.msra.mxu0 0
        %1339 = vmatprep.subr.bf16.mxu0 0
        %1340 = vmatpush1.bf16.msra.mxu0 0
        %1341 = vmatprep.subr.bf16.mxu0 0
        %1342 = vmatpush1.bf16.msra.mxu0 0
        %1343 = vmatprep.subr.bf16.mxu0 0
        %1344 = vmatpush1.bf16.msra.mxu0 0
        %1345 = vmatprep.subr.bf16.mxu0 0
        %1346 = vmatpush1.bf16.msra.mxu0 0
        %1347 = vmatprep.subr.bf16.mxu0 0
        %1348 = vmatpush1.bf16.msra.mxu0 0
        %1349 = vmatprep.subr.bf16.mxu0 0
        %1350 = vmatpush1.bf16.msra.mxu0 0
        %1351 = vmatprep.subr.bf16.mxu0 0
        %1352 = vmatpush1.bf16.msra.mxu0 0
        %1353 = vmatprep.subr.bf16.mxu0 0
        %1354 = vmatpush1.bf16.msra.mxu0 0
        %1355 = vmatprep.subr.bf16.mxu0 0
        %1356 = vmatpush1.bf16.msra.mxu0 0
        %1357 = vmatprep.mubr.bf16.mxu0 0
        %1358 = vmatmul.mubr.bf16.gmra.mrb[0].mxu0 %v1298
        %v1359 = vpop.f32.mrb[0].mxu0
        %v1360 = vadd.f32 0.0, %v1359
        %v1361 = vpop.f32.mrb[0].mxu0
        %v1362 = vadd.f32 0.0, %v1361
        %v1363 = vpop.f32.mrb[0].mxu0
        %v1364 = vpop.f32.mrb[0].mxu0
        %1365 = vdwg.mxu0
        %1366 = vmatprep.subr.bf16.mxu0 %v1311
        %1367 = vmatpush1.bf16.msra.mxu0 %v1308
        %1368 = vmatprep.subr.bf16.mxu0 0
        %1369 = vmatpush1.bf16.msra.mxu0 0
        %1370 = vmatprep.subr.bf16.mxu0 0
        %1371 = vmatpush1.bf16.msra.mxu0 0
        %1372 = vmatprep.subr.bf16.mxu0 0
        %1373 = vmatpush1.bf16.msra.mxu0 0
        %1374 = vmatprep.subr.bf16.mxu0 0
        %1375 = vmatpush1.bf16.msra.mxu0 0
        %1376 = vmatprep.subr.bf16.mxu0 0
        %1377 = vmatpush1.bf16.msra.mxu0 0
        %1378 = vmatprep.subr.bf16.mxu0 0
        %1379 = vmatpush1.bf16.msra.mxu0 0
        %1380 = vmatprep.subr.bf16.mxu0 0
        %1381 = vmatpush1.bf16.msra.mxu0 0
        %1382 = vmatprep.subr.bf16.mxu0 0
        %1383 = vmatpush1.bf16.msra.mxu0 0
        %1384 = vmatprep.subr.bf16.mxu0 0
        %1385 = vmatpush1.bf16.msra.mxu0 0
        %1386 = vmatprep.subr.bf16.mxu0 0
        %1387 = vmatpush1.bf16.msra.mxu0 0
        %1388 = vmatprep.subr.bf16.mxu0 0
        %1389 = vmatpush1.bf16.msra.mxu0 0
        %1390 = vmatprep.subr.bf16.mxu0 0
        %1391 = vmatpush1.bf16.msra.mxu0 0
        %1392 = vmatprep.subr.bf16.mxu0 0
        %1393 = vmatpush1.bf16.msra.mxu0 0
        %1394 = vmatprep.subr.bf16.mxu0 0
        %1395 = vmatpush1.bf16.msra.mxu0 0
        %1396 = vmatprep.subr.bf16.mxu0 0
        %1397 = vmatpush1.bf16.msra.mxu0 0
        %1398 = vmatprep.mubr.bf16.mxu0 0
        %1399 = vmatmul.mubr.bf16.gmra.mrb[0].mxu0 %v1298
        %v1400 = vpop.f32.mrb[0].mxu0
        %v1401 = vadd.f32 0.0, %v1400
        %v1402 = vpop.f32.mrb[0].mxu0
        %v1403 = vadd.f32 0.0, %v1402
        %v1404 = vpop.f32.mrb[0].mxu0
        %v1405 = vpop.f32.mrb[0].mxu0
        %1406 = vdwg.mxu0
        %1407 = vmatprep.subr.bf16.mxu0 %v1317
        %1408 = vmatpush1.bf16.msra.mxu0 %v1314
        %1409 = vmatprep.subr.bf16.mxu0 0
        %1410 = vmatpush1.bf16.msra.mxu0 0
        %1411 = vmatprep.subr.bf16.mxu0 0
        %1412 = vmatpush1.bf16.msra.mxu0 0
        %1413 = vmatprep.subr.bf16.mxu0 0
        %1414 = vmatpush1.bf16.msra.mxu0 0
        %1415 = vmatprep.subr.bf16.mxu0 0
        %1416 = vmatpush1.bf16.msra.mxu0 0
        %1417 = vmatprep.subr.bf16.mxu0 0
        %1418 = vmatpush1.bf16.msra.mxu0 0
        %1419 = vmatprep.subr.bf16.mxu0 0
        %1420 = vmatpush1.bf16.msra.mxu0 0
        %1421 = vmatprep.subr.bf16.mxu0 0
        %1422 = vmatpush1.bf16.msra.mxu0 0
        %1423 = vmatprep.subr.bf16.mxu0 0
        %1424 = vmatpush1.bf16.msra.mxu0 0
        %1425 = vmatprep.subr.bf16.mxu0 0
        %1426 = vmatpush1.bf16.msra.mxu0 0
        %1427 = vmatprep.subr.bf16.mxu0 0
        %1428 = vmatpush1.bf16.msra.mxu0 0
        %1429 = vmatprep.subr.bf16.mxu0 0
        %1430 = vmatpush1.bf16.msra.mxu0 0
        %1431 = vmatprep.subr.bf16.mxu0 0
        %1432 = vmatpush1.bf16.msra.mxu0 0
        %1433 = vmatprep.subr.bf16.mxu0 0
        %1434 = vmatpush1.bf16.msra.mxu0 0
        %1435 = vmatprep.subr.bf16.mxu0 0
        %1436 = vmatpush1.bf16.msra.mxu0 0
        %1437 = vmatprep.subr.bf16.mxu0 0
        %1438 = vmatpush1.bf16.msra.mxu0 0
        %1439 = vmatprep.mubr.bf16.mxu0 0
        %1440 = vmatmul.mubr.bf16.gmra.mrb[0].mxu0 %v1298
        %v1441 = vpop.f32.mrb[0].mxu0
        %v1442 = vadd.f32 0.0, %v1441
        %v1443 = vpop.f32.mrb[0].mxu0
        %v1444 = vadd.f32 0.0, %v1443
        %v1445 = vpop.f32.mrb[0].mxu0
        %v1446 = vpop.f32.mrb[0].mxu0
        %1447 = vdwg.mxu0
        %1448 = vmatprep.subr.bf16.mxu0 %v1323
        %1449 = vmatpush1.bf16.msra.mxu0 %v1320
        %1450 = vmatprep.subr.bf16.mxu0 0
        %1451 = vmatpush1.bf16.msra.mxu0 0
        %1452 = vmatprep.subr.bf16.mxu0 0
        %1453 = vmatpush1.bf16.msra.mxu0 0
        %1454 = vmatprep.subr.bf16.mxu0 0
        %1455 = vmatpush1.bf16.msra.mxu0 0
        %1456 = vmatprep.subr.bf16.mxu0 0
        %1457 = vmatpush1.bf16.msra.mxu0 0
        %1458 = vmatprep.subr.bf16.mxu0 0
        %1459 = vmatpush1.bf16.msra.mxu0 0
        %1460 = vmatprep.subr.bf16.mxu0 0
        %1461 = vmatpush1.bf16.msra.mxu0 0
        %1462 = vmatprep.subr.bf16.mxu0 0
        %1463 = vmatpush1.bf16.msra.mxu0 0
        %1464 = vmatprep.subr.bf16.mxu0 0
        %1465 = vmatpush1.bf16.msra.mxu0 0
        %1466 = vmatprep.subr.bf16.mxu0 0
        %1467 = vmatpush1.bf16.msra.mxu0 0
        %1468 = vmatprep.subr.bf16.mxu0 0
        %1469 = vmatpush1.bf16.msra.mxu0 0
        %1470 = vmatprep.subr.bf16.mxu0 0
        %1471 = vmatpush1.bf16.msra.mxu0 0
        %1472 = vmatprep.subr.bf16.mxu0 0
        %1473 = vmatpush1.bf16.msra.mxu0 0
        %1474 = vmatprep.subr.bf16.mxu0 0
        %1475 = vmatpush1.bf16.msra.mxu0 0
        %1476 = vmatprep.subr.bf16.mxu0 0
        %1477 = vmatpush1.bf16.msra.mxu0 0
        %1478 = vmatprep.subr.bf16.mxu0 0
        %1479 = vmatpush1.bf16.msra.mxu0 0
        %1480 = vmatprep.mubr.bf16.mxu0 0
        %1481 = vmatmul.mubr.bf16.gmra.mrb[0].mxu0 %v1298
        %v1482 = vpop.f32.mrb[0].mxu0
        %v1483 = vadd.f32 0.0, %v1482
        %v1484 = vpop.f32.mrb[0].mxu0
        %v1485 = vadd.f32 0.0, %v1484
        %v1486 = vpop.f32.mrb[0].mxu0
        %v1487 = vpop.f32.mrb[0].mxu0
        %1488 = vdwg.mxu0
        %v1490 = vsel %vm1296, %v1293, 0
        %v1493 = vsel %vm1300, %v1268, 0
        %v1496 = vsel %vm1300, %v1269, 0
        %v1499 = vsel %vm1300, %v1270, 0
        %v1502 = vsel %vm1300, %v1271, 0
        %v1505 = vsel %vm1300, %v1272, 0
        %v1508 = vsel %vm1300, %v1273, 0
        %v1511 = vsel %vm1300, %v1274, 0
        %v1514 = vsel %vm1300, %v1275, 0
        %1516 = vmatprep.subr.bf16.mxu0 %v1496
        %1517 = vmatpush1.bf16.msra.mxu0 %v1493
        %1518 = vmatprep.subr.bf16.mxu0 0
        %1519 = vmatpush1.bf16.msra.mxu0 0
        %1520 = vmatprep.subr.bf16.mxu0 0
        %1521 = vmatpush1.bf16.msra.mxu0 0
        %1522 = vmatprep.subr.bf16.mxu0 0
        %1523 = vmatpush1.bf16.msra.mxu0 0
        %1524 = vmatprep.subr.bf16.mxu0 0
        %1525 = vmatpush1.bf16.msra.mxu0 0
        %1526 = vmatprep.subr.bf16.mxu0 0
        %1527 = vmatpush1.bf16.msra.mxu0 0
        %1528 = vmatprep.subr.bf16.mxu0 0
        %1529 = vmatpush1.bf16.msra.mxu0 0
        %1530 = vmatprep.subr.bf16.mxu0 0
        %1531 = vmatpush1.bf16.msra.mxu0 0
        %1532 = vmatprep.subr.bf16.mxu0 0
        %1533 = vmatpush1.bf16.msra.mxu0 0
        %1534 = vmatprep.subr.bf16.mxu0 0
        %1535 = vmatpush1.bf16.msra.mxu0 0
        %1536 = vmatprep.subr.bf16.mxu0 0
        %1537 = vmatpush1.bf16.msra.mxu0 0
        %1538 = vmatprep.subr.bf16.mxu0 0
        %1539 = vmatpush1.bf16.msra.mxu0 0
        %1540 = vmatprep.subr.bf16.mxu0 0
        %1541 = vmatpush1.bf16.msra.mxu0 0
        %1542 = vmatprep.subr.bf16.mxu0 0
        %1543 = vmatpush1.bf16.msra.mxu0 0
        %1544 = vmatprep.subr.bf16.mxu0 0
        %1545 = vmatpush1.bf16.msra.mxu0 0
        %1546 = vmatprep.subr.bf16.mxu0 0
        %1547 = vmatpush1.bf16.msra.mxu0 0
        %1548 = vmatprep.mubr.bf16.mxu0 0
        %1549 = vmatmul.mubr.bf16.gmra.mrb[0].mxu0 %v1490
        %v1550 = vpop.f32.mrb[0].mxu0
        %v1551 = vadd.f32 %v1360, %v1550
        %v1552 = vpop.f32.mrb[0].mxu0
        %v1553 = vadd.f32 %v1362, %v1552
        %v1554 = vpop.f32.mrb[0].mxu0
        %v1555 = vpop.f32.mrb[0].mxu0
        %1556 = vdwg.mxu0
        %1557 = vmatprep.subr.bf16.mxu0 %v1502
        %1558 = vmatpush1.bf16.msra.mxu0 %v1499
        %1559 = vmatprep.subr.bf16.mxu0 0
        %1560 = vmatpush1.bf16.msra.mxu0 0
        %1561 = vmatprep.subr.bf16.mxu0 0
        %1562 = vmatpush1.bf16.msra.mxu0 0
        %1563 = vmatprep.subr.bf16.mxu0 0
        %1564 = vmatpush1.bf16.msra.mxu0 0
        %1565 = vmatprep.subr.bf16.mxu0 0
        %1566 = vmatpush1.bf16.msra.mxu0 0
        %1567 = vmatprep.subr.bf16.mxu0 0
        %1568 = vmatpush1.bf16.msra.mxu0 0
        %1569 = vmatprep.subr.bf16.mxu0 0
        %1570 = vmatpush1.bf16.msra.mxu0 0
        %1571 = vmatprep.subr.bf16.mxu0 0
        %1572 = vmatpush1.bf16.msra.mxu0 0
        %1573 = vmatprep.subr.bf16.mxu0 0
        %1574 = vmatpush1.bf16.msra.mxu0 0
        %1575 = vmatprep.subr.bf16.mxu0 0
        %1576 = vmatpush1.bf16.msra.mxu0 0
        %1577 = vmatprep.subr.bf16.mxu0 0
        %1578 = vmatpush1.bf16.msra.mxu0 0
        %1579 = vmatprep.subr.bf16.mxu0 0
        %1580 = vmatpush1.bf16.msra.mxu0 0
        %1581 = vmatprep.subr.bf16.mxu0 0
        %1582 = vmatpush1.bf16.msra.mxu0 0
        %1583 = vmatprep.subr.bf16.mxu0 0
        %1584 = vmatpush1.bf16.msra.mxu0 0
        %1585 = vmatprep.subr.bf16.mxu0 0
        %1586 = vmatpush1.bf16.msra.mxu0 0
        %1587 = vmatprep.subr.bf16.mxu0 0
        %1588 = vmatpush1.bf16.msra.mxu0 0
        %1589 = vmatprep.mubr.bf16.mxu0 0
        %1590 = vmatmul.mubr.bf16.gmra.mrb[0].mxu0 %v1490
        %v1591 = vpop.f32.mrb[0].mxu0
        %v1592 = vadd.f32 %v1401, %v1591
        %v1593 = vpop.f32.mrb[0].mxu0
        %v1594 = vadd.f32 %v1403, %v1593
        %v1595 = vpop.f32.mrb[0].mxu0
        %v1596 = vpop.f32.mrb[0].mxu0
        %1597 = vdwg.mxu0
        %1598 = vmatprep.subr.bf16.mxu0 %v1508
        %1599 = vmatpush1.bf16.msra.mxu0 %v1505
        %1600 = vmatprep.subr.bf16.mxu0 0
        %1601 = vmatpush1.bf16.msra.mxu0 0
        %1602 = vmatprep.subr.bf16.mxu0 0
        %1603 = vmatpush1.bf16.msra.mxu0 0
        %1604 = vmatprep.subr.bf16.mxu0 0
        %1605 = vmatpush1.bf16.msra.mxu0 0
        %1606 = vmatprep.subr.bf16.mxu0 0
        %1607 = vmatpush1.bf16.msra.mxu0 0
        %1608 = vmatprep.subr.bf16.mxu0 0
        %1609 = vmatpush1.bf16.msra.mxu0 0
        %1610 = vmatprep.subr.bf16.mxu0 0
        %1611 = vmatpush1.bf16.msra.mxu0 0
        %1612 = vmatprep.subr.bf16.mxu0 0
        %1613 = vmatpush1.bf16.msra.mxu0 0
        %1614 = vmatprep.subr.bf16.mxu0 0
        %1615 = vmatpush1.bf16.msra.mxu0 0
        %1616 = vmatprep.subr.bf16.mxu0 0
        %1617 = vmatpush1.bf16.msra.mxu0 0
        %1618 = vmatprep.subr.bf16.mxu0 0
        %1619 = vmatpush1.bf16.msra.mxu0 0
        %1620 = vmatprep.subr.bf16.mxu0 0
        %1621 = vmatpush1.bf16.msra.mxu0 0
        %1622 = vmatprep.subr.bf16.mxu0 0
        %1623 = vmatpush1.bf16.msra.mxu0 0
        %1624 = vmatprep.subr.bf16.mxu0 0
        %1625 = vmatpush1.bf16.msra.mxu0 0
        %1626 = vmatprep.subr.bf16.mxu0 0
        %1627 = vmatpush1.bf16.msra.mxu0 0
        %1628 = vmatprep.subr.bf16.mxu0 0
        %1629 = vmatpush1.bf16.msra.mxu0 0
        %1630 = vmatprep.mubr.bf16.mxu0 0
        %1631 = vmatmul.mubr.bf16.gmra.mrb[0].mxu0 %v1490
        %v1632 = vpop.f32.mrb[0].mxu0
        %v1633 = vadd.f32 %v1442, %v1632
        %v1634 = vpop.f32.mrb[0].mxu0
        %v1635 = vadd.f32 %v1444, %v1634
        %v1636 = vpop.f32.mrb[0].mxu0
        %v1637 = vpop.f32.mrb[0].mxu0
        %1638 = vdwg.mxu0
        %1639 = vmatprep.subr.bf16.mxu0 %v1514
        %1640 = vmatpush1.bf16.msra.mxu0 %v1511
        %1641 = vmatprep.subr.bf16.mxu0 0
        %1642 = vmatpush1.bf16.msra.mxu0 0
        %1643 = vmatprep.subr.bf16.mxu0 0
        %1644 = vmatpush1.bf16.msra.mxu0 0
        %1645 = vmatprep.subr.bf16.mxu0 0
        %1646 = vmatpush1.bf16.msra.mxu0 0
        %1647 = vmatprep.subr.bf16.mxu0 0
        %1648 = vmatpush1.bf16.msra.mxu0 0
        %1649 = vmatprep.subr.bf16.mxu0 0
        %1650 = vmatpush1.bf16.msra.mxu0 0
        %1651 = vmatprep.subr.bf16.mxu0 0
        %1652 = vmatpush1.bf16.msra.mxu0 0
        %1653 = vmatprep.subr.bf16.mxu0 0
        %1654 = vmatpush1.bf16.msra.mxu0 0
        %1655 = vmatprep.subr.bf16.mxu0 0
        %1656 = vmatpush1.bf16.msra.mxu0 0
        %1657 = vmatprep.subr.bf16.mxu0 0
        %1658 = vmatpush1.bf16.msra.mxu0 0
        %1659 = vmatprep.subr.bf16.mxu0 0
        %1660 = vmatpush1.bf16.msra.mxu0 0
        %1661 = vmatprep.subr.bf16.mxu0 0
        %1662 = vmatpush1.bf16.msra.mxu0 0
        %1663 = vmatprep.subr.bf16.mxu0 0
        %1664 = vmatpush1.bf16.msra.mxu0 0
        %1665 = vmatprep.subr.bf16.mxu0 0
        %1666 = vmatpush1.bf16.msra.mxu0 0
        %1667 = vmatprep.subr.bf16.mxu0 0
        %1668 = vmatpush1.bf16.msra.mxu0 0
        %1669 = vmatprep.subr.bf16.mxu0 0
        %1670 = vmatpush1.bf16.msra.mxu0 0
        %1671 = vmatprep.mubr.bf16.mxu0 0
        %1672 = vmatmul.mubr.bf16.gmra.mrb[0].mxu0 %v1490
        %v1673 = vpop.f32.mrb[0].mxu0
        %v1674 = vadd.f32 %v1483, %v1673
        %v1675 = vpop.f32.mrb[0].mxu0
        %v1676 = vadd.f32 %v1485, %v1675
        %v1677 = vpop.f32.mrb[0].mxu0
        %v1678 = vpop.f32.mrb[0].mxu0
        %1679 = vdwg.mxu0
        %v1680 = vld [vmem:[%s7] sm:$0xff]
        %1682 = vset.pattern.permute.xlu0 0
        %1683 = vperm.xlu0 %1682, %v1680
        %v1684 = vpop.permute.xlu0 %1683
        %v1686 = vadd.f32 %v1551, %v1684
        %v1687 = vadd.f32 %v1553, %v1684
        %v1688 = vadd.f32 %v1592, %v1684
        %v1689 = vadd.f32 %v1594, %v1684
        %v1690 = vadd.f32 %v1633, %v1684
        %v1691 = vadd.f32 %v1635, %v1684
        %v1692 = vadd.f32 %v1674, %v1684
        %v1693 = vadd.f32 %v1676, %v1684
        %v1694 = vadd.f32 %v1686, %v344
        %v1695 = vadd.f32 %v1687, %v345
        %v1696 = vadd.f32 %v1688, %v346
        %v1697 = vadd.f32 %v1689, %v347
        %v1698 = vadd.f32 %v1690, %v348
        %v1699 = vadd.f32 %v1691, %v349
        %v1700 = vadd.f32 %v1692, %v350
        %v1701 = vadd.f32 %v1693, %v351
        %v1702 = vmax.f32 %v1694, 0.0
        %v1703 = vmax.f32 %v1695, 0.0
        %v1704 = vmax.f32 %v1696, 0.0
        %v1705 = vmax.f32 %v1697, 0.0
        %v1706 = vmax.f32 %v1698, 0.0
        %v1707 = vmax.f32 %v1699, 0.0
        %v1708 = vmax.f32 %v1700, 0.0
        %v1709 = vmax.f32 %v1701, 0.0
        %1710 = vst [vmem:[%s339] sm:$0xff] %v1702
        %1711 = vst [vmem:[%s339 + $0x8] sm:$0xff] %v1703
        %1712 = vst [vmem:[%s339 + $0x10] sm:$0xff] %v1704
        %1713 = vst [vmem:[%s339 + $0x18] sm:$0xff] %v1705
        %1714 = vst [vmem:[%s339 + $0x20] sm:$0xff] %v1706
        %1715 = vst [vmem:[%s339 + $0x28] sm:$0xff] %v1707
        %1716 = vst [vmem:[%s339 + $0x30] sm:$0xff] %v1708
        %1717 = vst [vmem:[%s339 + $0x38] sm:$0xff] %v1709
        %s1718 = sand.u32 %s222, 1
        %s1719 = scalar_lea.sflag [#allocation4], %s1718
        %s1720 = sand.u32 %s222, 1
        %s1721 = smul.addr %s1720, 64
        %s1722 = scalar_lea.vmem [#allocation5], %s1721
        // Predicated region
        $region57: #{tpu_custom_call.1} parent=51 // pred_check
          %p1723 = pneg %p232
        $region58: #{tpu_custom_call.1} parent=51 // pred_check_branch
          %1725 = sbr.rel (%p1723) target = $region60
        $region59: #{tpu_custom_call.1} parent=51 // pred_region
          %s1726 = smul.u32 8, %s30
          %s1728 = ssub.s32 1024, 1024
          %1729 = vsyncadd %s1719, %s1728
          %s1730 = smul.addr %s29, 16
          %s1731 = sadd.s32 %s1726, %s1730
          %s1732 = smul.addr %s1731, 128
          %s1733 = scalar_lea.hbm %s8, %s1732
          %s1735 = sshll.u32 %s1722, 4
          %s1736 = int_to_ptr.vmem [resolvable:$true] %s1735
          %1738 = dma.vmem_to_hbm [thread:$0]  %s1736, 1024, %s1733, %s1719
        $region60: #{tpu_custom_call.1} parent=51 // pred_fallthru
          _
      $region52: #{tpu_custom_call.1} parent=5 // pred_fallthru
        _
      %p1739 = scmp.le.s32.totalorder 2, %s20
      // Predicated region
      $region61: #{tpu_custom_call.1} parent=5 // pred_check
        %p1740 = pneg %p1739
      $region62: #{tpu_custom_call.1} parent=5 // pred_check_branch
        %1742 = sbr.rel (%p1740) target = $region64
      $region63: #{tpu_custom_call.1} parent=5 // pred_region
        %s1743 = ssub.s32 %s20, 2
        // Predicated region
        $region65: #{tpu_custom_call.1} parent=63 // pred_check
          %p1744 = pneg %p238
        $region66: #{tpu_custom_call.1} parent=63 // pred_check_branch
          %1746 = sbr.rel (%p1744) target = $region68
        $region67: #{tpu_custom_call.1} parent=63 // pred_region
          %s1747 = sand.u32 %s223, 1
          %s1748 = scalar_lea.sflag [#allocation4], %s1747
          %s1749 = sand.u32 %s223, 1
          %s1750 = smul.addr %s1749, 64
          %s1751 = scalar_lea.vmem [#allocation5], %s1750
          %1752 = dma.done %s1748, 1024
        $region68: #{tpu_custom_call.1} parent=63 // pred_fallthru
          _
      $region64: #{tpu_custom_call.1} parent=5 // pred_fallthru
        _
    $region6: #{tpu_custom_call.1} parent=1 // loop_footer
      %s24 = sadd.s32 1, %s20
    $region7: #{tpu_custom_call.1} parent=1 // loop_footer_branch
      %19 = sbr.rel target = $region3
    $region8: #{tpu_custom_call.1} parent=1 // loop_exit
      _
    %1753 = vsyncpa [#allocation3], 1
    %s1754 = scalar_lea.sflag [#allocation3], 1
    %1755 = vsyncpa %s1754, 1
    %1756 = vsyncpa [#allocation4], 1
    %s1757 = scalar_lea.sflag [#allocation4], 1
    %1758 = vsyncpa %s1757, 1

</llo_original>
